<compile_context>
chip_gen: v5e
topology: v5e:2x2
jax: 0.10.0
libtpu: 0.0.40
codegen_flags: <defaults>
</compile_context>

<pallas_src>
import functools
import math

import jax
import jax.numpy as jnp
from jax import lax
from jax.experimental import pallas as pl
from jax.experimental.pallas import tpu as pltpu


# ----------------------------------------------------------------------------
# Kernel
# ----------------------------------------------------------------------------

def _conv_transpose_kernel(nbr_ref, v_ref, f_ref, dirs_ref, b_ref, out_ref, *,
                           support_num, out_channel, neighbor_num):
    idx = nbr_ref[...]                                 # (V, N) int32
    verts = v_ref[...]                                 # (V, 3) f32
    feat = f_ref[...]                                  # (V, Cin) f32
    dirs = dirs_ref[...]                               # (3, S*Co), cols pre-normalized
    bias = b_ref[...]                                  # (1, Cin)
    V = verts.shape[0]
    S, Co, N = support_num, out_channel, neighbor_num
    W = S * Co

    # Fused gather RHS: project the vertices ONCE, gather coords + projections
    # together.  G = [verts | verts @ dirs]  -> (V, 3 + W)
    proj = jnp.dot(verts, dirs, preferred_element_type=jnp.float32)      # (V, W)
    g = jnp.concatenate([verts, proj], axis=1)                           # (V, 3+W)

    # Stacked one-hot gather: one long MXU matmul for all N neighbors.
    col = lax.broadcasted_iota(jnp.int32, (V, V), 1)
    onehot = jnp.concatenate(
        [(idx[:, n:n + 1] == col).astype(jnp.float32) for n in range(N)],
        axis=0)                                                          # (N*V, V)
    gathered = jnp.dot(onehot, g, preferred_element_type=jnp.float32)    # (N*V, 3+W)

    # Per-neighbor direction normalization + running max over neighbors.
    theta_max = None
    for n in range(N):                                 # static, small neighbor loop
        diff = gathered[n * V:(n + 1) * V, :] - g      # [nbr - verts | P_nbr - P]
        d = diff[:, 0:3]
        d2 = jnp.sum(d * d, axis=1, keepdims=True)
        inv = lax.rsqrt(jnp.maximum(d2, 1e-24))        # == 1/max(||d||, 1e-12)
        th = jnp.maximum(diff[:, 3:] * inv, 0.0)       # relu(normalize(d) @ dirs)
        theta_max = th if theta_max is None else jnp.maximum(theta_max, th)

    # out[v, s] = sum_c feat[v, c] * theta_max[v, s*Co + c]   (Cin == Co)
    feat_rep = feat if S == 1 else jnp.concatenate([feat] * S, axis=1)   # (V, W)
    prod = theta_max * feat_rep
    row = lax.broadcasted_iota(jnp.int32, (W, S), 0)
    grp = lax.broadcasted_iota(jnp.int32, (W, S), 1) * Co
    seg = ((row >= grp) & (row < grp + Co)).astype(jnp.float32)          # (W, S)
    out_vs = jnp.dot(prod, seg, preferred_element_type=jnp.float32)      # (V, S)

    out_ref[...] = out_vs + bias                       # (V, S) + (1, Cin) broadcast


# ----------------------------------------------------------------------------
# Wrapper
# ----------------------------------------------------------------------------

def conv_transpose_layer(neighbor_index, vertices, feature_map, weights, bias,
                         directions, support_num, out_channel):
    """Pallas implementation of Conv_transpose_layer.forward."""
    del weights                                        # unused in reference forward()
    bs, V, N = neighbor_index.shape
    Cin = feature_map.shape[2]
    S, Co = support_num, out_channel
    assert Cin == Co, "reference matmul requires in_channel == out_channel"
    if S == Cin or Cin == 1:
        out_cols = max(S, Cin)
    elif S == 1:
        out_cols = Cin
    else:
        raise ValueError("bias broadcast requires support_num in {1, in_channel}")

    # F.normalize(self.directions, dim=0)
    dirs_n = directions / jnp.maximum(
        jnp.sqrt(jnp.sum(directions * directions, axis=0, keepdims=True)), 1e-12)

    W = S * Co
    kern = functools.partial(_conv_transpose_kernel, support_num=S,
                             out_channel=Co, neighbor_num=N)

    # Rough per-step VMEM budget: double-buffered IO + stacked one-hot +
    # gathered block.  Raise the scoped limit only when needed; cap at 64 MiB
    # so the setting remains valid on v7x.
    itemsize = 4
    io_bytes = 2 * itemsize * (V * N + 4 * V + V * Cin + 3 * W + Cin + V * out_cols)
    scratch_bytes = itemsize * (N * V * V + N * V * (3 + W) + 4 * V * (3 + W))
    vmem_est = io_bytes + scratch_bytes
    cp_kwargs = dict(dimension_semantics=("parallel",))
    if vmem_est > 32 * 1024 * 1024:
        cp_kwargs["vmem_limit_bytes"] = int(min(vmem_est * 1.25, 64 * 1024 * 1024))
    # TODO(synk): for very large V (stacked one-hot is N*V^2*4 bytes) add a
    # V-row tile grid axis instead of whole-V tiles (needed on v7x's 64 MiB).

    cost = pl.CostEstimate(
        flops=int(bs * (2 * N * V * V * (3 + W) + 2 * V * 3 * W
                        + 2 * V * W * S + 8 * N * V * W)),
        transcendentals=int(bs * N * V),
        bytes_accessed=int(itemsize * (bs * (V * N + 3 * V + V * Cin + V * out_cols)
                                       + 3 * W + Cin)),
    )

    return pl.pallas_call(
        kern,
        grid=(bs,),
        in_specs=[pl.BlockSpec((None, V, N), lambda b: (b, 0, 0)),
                  pl.BlockSpec((None, V, 3), lambda b: (b, 0, 0)),
                  pl.BlockSpec((None, V, Cin), lambda b: (b, 0, 0)),
                  pl.BlockSpec((3, W), lambda b: (0, 0)),
                  pl.BlockSpec((1, Cin), lambda b: (0, 0))],
        out_specs=pl.BlockSpec((None, V, out_cols), lambda b: (b, 0, 0)),
        out_shape=jax.ShapeDtypeStruct((bs, V, out_cols), jnp.float32),
        compiler_params=pltpu.CompilerParams(**cp_kwargs),
        cost_estimate=cost,
    )(neighbor_index.astype(jnp.int32),
      vertices.astype(jnp.float32),
      feature_map.astype(jnp.float32),
      dirs_n.astype(jnp.float32),
      bias[None, :].astype(jnp.float32))


# ----------------------------------------------------------------------------
# Pure-JAX reference (mirror of the torch code) and test glue
# ----------------------------------------------------------------------------

def conv_transpose_ref(neighbor_index, vertices, feature_map, bias, directions,
                       support_num, out_channel):
    bs, V, N = neighbor_index.shape
    S, Co = support_num, out_channel
    hi = jax.lax.Precision.HIGHEST
    b_idx = jnp.arange(bs)[:, None, None]
    neighbors = vertices[b_idx, neighbor_index]                      # (bs, V, N, 3)
    direction = neighbors - vertices[:, :, None, :]
    norm = jnp.sqrt(jnp.sum(direction * direction, axis=-1, keepdims=True))
    dirn = direction / jnp.maximum(norm, 1e-12)
    sdirs = directions / jnp.maximum(
        jnp.sqrt(jnp.sum(directions * directions, axis=0, keepdims=True)), 1e-12)
    theta = jnp.maximum(jnp.matmul(dirn, sdirs, precision=hi), 0.0)  # (bs, V, N, S*Co)
    theta = theta.reshape(bs, V, N, S, Co)
    theta = jnp.max(theta, axis=2)                                   # (bs, V, S, Co)
    fm = feature_map[:, :, None, :]                                  # (bs, V, 1, Cin)
    out = jnp.matmul(fm, jnp.swapaxes(theta, 2, 3), precision=hi)    # (bs, V, 1, S)
    out = jnp.squeeze(out, axis=2)                                   # (bs, V, S)
    return out + bias[None, :]


def init_conv_transpose_params(key, in_channel, out_channel, support_num):
    stdv = 1.0 / math.sqrt(out_channel * (support_num + 1))
    kw, kb, kd = jax.random.split(key, 3)
    weights = jax.random.uniform(kw, (in_channel, (support_num + 1) * out_channel),
                                 jnp.float32, -stdv, stdv)           # unused in forward
    bias = jax.random.uniform(kb, (in_channel,), jnp.float32, -stdv, stdv)
    directions = jax.random.uniform(kd, (3, support_num * out_channel),
                                    jnp.float32, -stdv, stdv)
    return weights, bias, directions


def knn_indices(vertices, k):
    """Test-input construction only (pure JAX glue): k nearest, self excluded."""
    d2 = jnp.sum((vertices[:, :, None, :] - vertices[:, None, :, :]) ** 2, axis=-1)
    return jnp.argsort(d2, axis=-1)[:, :, 1:k + 1].astype(jnp.int32)


# ----------------------------------------------------------------------------

if __name__ == "__main__":
    bs, V, N = 2, 64, 4
    root = jax.random.PRNGKey(0)
    k_v, k_f1, k_p1, k_f2, k_p2 = jax.random.split(root, 5)

    vertices = jax.random.normal(k_v, (bs, V, 3), jnp.float32)
    nbr_idx = knn_indices(vertices, N)                 # (bs, V, N)

    # Config 1: support_num = 1, in_channel == out_channel == 32
    Cin1, Co1, S1 = 32, 32, 1
    feat1 = jax.random.normal(k_f1, (bs, V, Cin1), jnp.float32)
    w1, b1, d1 = init_conv_transpose_params(k_p1, Cin1, Co1, S1)
    out1 = conv_transpose_layer(nbr_idx, vertices, feat1, w1, b1, d1, S1, Co1)
    ref1 = conv_transpose_ref(nbr_idx, vertices, feat1, b1, d1, S1, Co1)

    # Config 2: support_num == in_channel == out_channel == 4 (exercises S > 1)
    Cin2, Co2, S2 = 4, 4, 4
    feat2 = jax.random.normal(k_f2, (bs, V, Cin2), jnp.float32)
    w2, b2, d2 = init_conv_transpose_params(k_p2, Cin2, Co2, S2)
    out2 = conv_transpose_layer(nbr_idx, vertices, feat2, w2, b2, d2, S2, Co2)
    ref2 = conv_transpose_ref(nbr_idx, vertices, feat2, b2, d2, S2, Co2)

    jax.block_until_ready((out1, out2))
    assert out1.shape == (bs, V, Cin1), out1.shape
    assert out2.shape == (bs, V, S2), out2.shape
    err1 = float(jnp.max(jnp.abs(out1 - ref1)))
    err2 = float(jnp.max(jnp.abs(out2 - ref2)))
    assert jnp.allclose(out1, ref1, rtol=1e-3, atol=1e-3), err1
    assert jnp.allclose(out2, ref2, rtol=1e-3, atol=1e-3), err2
    print("KERNEL_OK")
</pallas_src>

<mosaic_0001>
module attributes {stable_mosaic.version = 11 : i64} {
  func.func @_conv_transpose_kernel(%arg0: i32, %arg1: memref<1x64x4xi32, #tpu.memory_space<vmem>>, %arg2: memref<1x64x3xf32, #tpu.memory_space<vmem>>, %arg3: memref<1x64x32xf32, #tpu.memory_space<vmem>>, %arg4: memref<3x32xf32, #tpu.memory_space<vmem>>, %arg5: memref<1x32xf32, #tpu.memory_space<vmem>>, %arg6: memref<1x64x32xf32, #tpu.memory_space<vmem>>) attributes {dimension_semantics = [#tpu.dimension_semantics<parallel>], iteration_bounds = array<i64: 2>, scalar_prefetch = 0 : i64, scratch_operands = 0 : i64, tpu.core_type = #tpu.core_type<tc>, window_params = [{transform_indices = @transform_0, window_bounds = array<i64: 1, 64, 4>}, {transform_indices = @transform_1, window_bounds = array<i64: 1, 64, 3>}, {transform_indices = @transform_2, window_bounds = array<i64: 1, 64, 32>}, {pipeline_mode = #tpu.pipeline_mode<synchronous>, transform_indices = @transform_3, window_bounds = array<i64: 3, 32>}, {pipeline_mode = #tpu.pipeline_mode<synchronous>, transform_indices = @transform_4, window_bounds = array<i64: 1, 32>}, {transform_indices = @transform_5, window_bounds = array<i64: 1, 64, 32>}]} {
    %c0 = arith.constant 0 : index
    %c0_0 = arith.constant 0 : index
    %c0_1 = arith.constant 0 : index
    %0 = vector.load %arg1[%c0, %c0_0, %c0_1] : memref<1x64x4xi32, #tpu.memory_space<vmem>>, vector<1x64x4xi32>
    %1 = vector.shape_cast %0 : vector<1x64x4xi32> to vector<64x4xi32>
    %c0_2 = arith.constant 0 : index
    %c0_3 = arith.constant 0 : index
    %c0_4 = arith.constant 0 : index
    %2 = vector.load %arg2[%c0_2, %c0_3, %c0_4] : memref<1x64x3xf32, #tpu.memory_space<vmem>>, vector<1x64x3xf32>
    %3 = vector.shape_cast %2 : vector<1x64x3xf32> to vector<64x3xf32>
    %c0_5 = arith.constant 0 : index
    %c0_6 = arith.constant 0 : index
    %c0_7 = arith.constant 0 : index
    %4 = vector.load %arg3[%c0_5, %c0_6, %c0_7] : memref<1x64x32xf32, #tpu.memory_space<vmem>>, vector<1x64x32xf32>
    %5 = vector.shape_cast %4 : vector<1x64x32xf32> to vector<64x32xf32>
    %c0_8 = arith.constant 0 : index
    %c0_9 = arith.constant 0 : index
    %6 = vector.load %arg4[%c0_8, %c0_9] : memref<3x32xf32, #tpu.memory_space<vmem>>, vector<3x32xf32>
    %c0_10 = arith.constant 0 : index
    %c0_11 = arith.constant 0 : index
    %7 = vector.load %arg5[%c0_10, %c0_11] : memref<1x32xf32, #tpu.memory_space<vmem>>, vector<1x32xf32>
    %cst = arith.constant dense<0.000000e+00> : vector<64x32xf32>
    %8 = tpu.matmul %3, %6, %cst {dimension_numbers = #tpu.dot_dimension_numbers<[1], [0], [0], [1], [0, 0, 1, 1], [], []>} : vector<64x3xf32>, vector<3x32xf32>, vector<64x32xf32> -> vector<64x32xf32>
    %9 = tpu.concatenate %3, %8 in 1 : vector<64x3xf32>, vector<64x32xf32> -> vector<64x35xf32>
    %10 = tpu.iota {dimensions = array<i32: 1>} : vector<64x64xi32>
    %11 = vector.extract_strided_slice %1 {offsets = [0, 0], sizes = [64, 1], strides = [1, 1]} : vector<64x4xi32> to vector<64x1xi32>
    %12 = vector.broadcast %11 : vector<64x1xi32> to vector<64x64xi32>
    %13 = arith.cmpi eq, %12, %10 : vector<64x64xi32>
    %14 = arith.extui %13 : vector<64x64xi1> to vector<64x64xi32>
    %15 = arith.sitofp %14 : vector<64x64xi32> to vector<64x64xf32>
    %16 = vector.extract_strided_slice %1 {offsets = [0, 1], sizes = [64, 1], strides = [1, 1]} : vector<64x4xi32> to vector<64x1xi32>
    %17 = vector.broadcast %16 : vector<64x1xi32> to vector<64x64xi32>
    %18 = arith.cmpi eq, %17, %10 : vector<64x64xi32>
    %19 = arith.extui %18 : vector<64x64xi1> to vector<64x64xi32>
    %20 = arith.sitofp %19 : vector<64x64xi32> to vector<64x64xf32>
    %21 = vector.extract_strided_slice %1 {offsets = [0, 2], sizes = [64, 1], strides = [1, 1]} : vector<64x4xi32> to vector<64x1xi32>
    %22 = vector.broadcast %21 : vector<64x1xi32> to vector<64x64xi32>
    %23 = arith.cmpi eq, %22, %10 : vector<64x64xi32>
    %24 = arith.extui %23 : vector<64x64xi1> to vector<64x64xi32>
    %25 = arith.sitofp %24 : vector<64x64xi32> to vector<64x64xf32>
    %26 = vector.extract_strided_slice %1 {offsets = [0, 3], sizes = [64, 1], strides = [1, 1]} : vector<64x4xi32> to vector<64x1xi32>
    %27 = vector.broadcast %26 : vector<64x1xi32> to vector<64x64xi32>
    %28 = arith.cmpi eq, %27, %10 : vector<64x64xi32>
    %29 = arith.extui %28 : vector<64x64xi1> to vector<64x64xi32>
    %30 = arith.sitofp %29 : vector<64x64xi32> to vector<64x64xf32>
    %31 = tpu.concatenate %15, %20, %25, %30 in 0 : vector<64x64xf32>, vector<64x64xf32>, vector<64x64xf32>, vector<64x64xf32> -> vector<256x64xf32>
    %cst_12 = arith.constant dense<0.000000e+00> : vector<256x35xf32>
    %32 = tpu.matmul %31, %9, %cst_12 {dimension_numbers = #tpu.dot_dimension_numbers<[1], [0], [0], [1], [0, 0, 1, 1], [], []>} : vector<256x64xf32>, vector<64x35xf32>, vector<256x35xf32> -> vector<256x35xf32>
    %33 = vector.extract_strided_slice %32 {offsets = [0, 0], sizes = [64, 35], strides = [1, 1]} : vector<256x35xf32> to vector<64x35xf32>
    %34 = arith.subf %33, %9 : vector<64x35xf32>
    %35 = vector.extract_strided_slice %34 {offsets = [0, 0], sizes = [64, 3], strides = [1, 1]} : vector<64x35xf32> to vector<64x3xf32>
    %36 = arith.mulf %35, %35 : vector<64x3xf32>
    %cst_13 = arith.constant dense<0.000000e+00> : vector<64xf32>
    %37 = vector.multi_reduction <add>, %36, %cst_13 [1] : vector<64x3xf32> to vector<64xf32>
    %38 = vector.shape_cast %37 : vector<64xf32> to vector<64x1xf32>
    %cst_14 = arith.constant 1.000000e-24 : f32
    %39 = vector.broadcast %cst_14 : f32 to vector<64x1xf32>
    %40 = arith.maximumf %38, %39 : vector<64x1xf32>
    %41 = math.rsqrt %40 : vector<64x1xf32>
    %42 = vector.extract_strided_slice %34 {offsets = [0, 3], sizes = [64, 32], strides = [1, 1]} : vector<64x35xf32> to vector<64x32xf32>
    %43 = vector.broadcast %41 : vector<64x1xf32> to vector<64x32xf32>
    %44 = arith.mulf %42, %43 : vector<64x32xf32>
    %cst_15 = arith.constant 0.000000e+00 : f32
    %45 = vector.broadcast %cst_15 : f32 to vector<64x32xf32>
    %46 = arith.maximumf %44, %45 : vector<64x32xf32>
    %47 = vector.extract_strided_slice %32 {offsets = [64, 0], sizes = [64, 35], strides = [1, 1]} : vector<256x35xf32> to vector<64x35xf32>
    %48 = arith.subf %47, %9 : vector<64x35xf32>
    %49 = vector.extract_strided_slice %48 {offsets = [0, 0], sizes = [64, 3], strides = [1, 1]} : vector<64x35xf32> to vector<64x3xf32>
    %50 = arith.mulf %49, %49 : vector<64x3xf32>
    %cst_16 = arith.constant dense<0.000000e+00> : vector<64xf32>
    %51 = vector.multi_reduction <add>, %50, %cst_16 [1] : vector<64x3xf32> to vector<64xf32>
    %52 = vector.shape_cast %51 : vector<64xf32> to vector<64x1xf32>
    %cst_17 = arith.constant 1.000000e-24 : f32
    %53 = vector.broadcast %cst_17 : f32 to vector<64x1xf32>
    %54 = arith.maximumf %52, %53 : vector<64x1xf32>
    %55 = math.rsqrt %54 : vector<64x1xf32>
    %56 = vector.extract_strided_slice %48 {offsets = [0, 3], sizes = [64, 32], strides = [1, 1]} : vector<64x35xf32> to vector<64x32xf32>
    %57 = vector.broadcast %55 : vector<64x1xf32> to vector<64x32xf32>
    %58 = arith.mulf %56, %57 : vector<64x32xf32>
    %cst_18 = arith.constant 0.000000e+00 : f32
    %59 = vector.broadcast %cst_18 : f32 to vector<64x32xf32>
    %60 = arith.maximumf %58, %59 : vector<64x32xf32>
    %61 = arith.maximumf %46, %60 : vector<64x32xf32>
    %62 = vector.extract_strided_slice %32 {offsets = [128, 0], sizes = [64, 35], strides = [1, 1]} : vector<256x35xf32> to vector<64x35xf32>
    %63 = arith.subf %62, %9 : vector<64x35xf32>
    %64 = vector.extract_strided_slice %63 {offsets = [0, 0], sizes = [64, 3], strides = [1, 1]} : vector<64x35xf32> to vector<64x3xf32>
    %65 = arith.mulf %64, %64 : vector<64x3xf32>
    %cst_19 = arith.constant dense<0.000000e+00> : vector<64xf32>
    %66 = vector.multi_reduction <add>, %65, %cst_19 [1] : vector<64x3xf32> to vector<64xf32>
    %67 = vector.shape_cast %66 : vector<64xf32> to vector<64x1xf32>
    %cst_20 = arith.constant 1.000000e-24 : f32
    %68 = vector.broadcast %cst_20 : f32 to vector<64x1xf32>
    %69 = arith.maximumf %67, %68 : vector<64x1xf32>
    %70 = math.rsqrt %69 : vector<64x1xf32>
    %71 = vector.extract_strided_slice %63 {offsets = [0, 3], sizes = [64, 32], strides = [1, 1]} : vector<64x35xf32> to vector<64x32xf32>
    %72 = vector.broadcast %70 : vector<64x1xf32> to vector<64x32xf32>
    %73 = arith.mulf %71, %72 : vector<64x32xf32>
    %cst_21 = arith.constant 0.000000e+00 : f32
    %74 = vector.broadcast %cst_21 : f32 to vector<64x32xf32>
    %75 = arith.maximumf %73, %74 : vector<64x32xf32>
    %76 = arith.maximumf %61, %75 : vector<64x32xf32>
    %77 = vector.extract_strided_slice %32 {offsets = [192, 0], sizes = [64, 35], strides = [1, 1]} : vector<256x35xf32> to vector<64x35xf32>
    %78 = arith.subf %77, %9 : vector<64x35xf32>
    %79 = vector.extract_strided_slice %78 {offsets = [0, 0], sizes = [64, 3], strides = [1, 1]} : vector<64x35xf32> to vector<64x3xf32>
    %80 = arith.mulf %79, %79 : vector<64x3xf32>
    %cst_22 = arith.constant dense<0.000000e+00> : vector<64xf32>
    %81 = vector.multi_reduction <add>, %80, %cst_22 [1] : vector<64x3xf32> to vector<64xf32>
    %82 = vector.shape_cast %81 : vector<64xf32> to vector<64x1xf32>
    %cst_23 = arith.constant 1.000000e-24 : f32
    %83 = vector.broadcast %cst_23 : f32 to vector<64x1xf32>
    %84 = arith.maximumf %82, %83 : vector<64x1xf32>
    %85 = math.rsqrt %84 : vector<64x1xf32>
    %86 = vector.extract_strided_slice %78 {offsets = [0, 3], sizes = [64, 32], strides = [1, 1]} : vector<64x35xf32> to vector<64x32xf32>
    %87 = vector.broadcast %85 : vector<64x1xf32> to vector<64x32xf32>
    %88 = arith.mulf %86, %87 : vector<64x32xf32>
    %cst_24 = arith.constant 0.000000e+00 : f32
    %89 = vector.broadcast %cst_24 : f32 to vector<64x32xf32>
    %90 = arith.maximumf %88, %89 : vector<64x32xf32>
    %91 = arith.maximumf %76, %90 : vector<64x32xf32>
    %92 = arith.mulf %91, %5 : vector<64x32xf32>
    %93 = tpu.iota {dimensions = array<i32: 0>} : vector<32x1xi32>
    %94 = tpu.iota {dimensions = array<i32: 1>} : vector<32x1xi32>
    %c32_i32 = arith.constant 32 : i32
    %95 = vector.broadcast %c32_i32 : i32 to vector<32x1xi32>
    %96 = arith.muli %94, %95 : vector<32x1xi32>
    %97 = arith.cmpi sge, %93, %96 : vector<32x1xi32>
    %c32_i32_25 = arith.constant 32 : i32
    %98 = vector.broadcast %c32_i32_25 : i32 to vector<32x1xi32>
    %99 = arith.addi %96, %98 : vector<32x1xi32>
    %100 = arith.cmpi slt, %93, %99 : vector<32x1xi32>
    %101 = arith.andi %97, %100 : vector<32x1xi1>
    %102 = arith.extui %101 : vector<32x1xi1> to vector<32x1xi32>
    %103 = arith.sitofp %102 : vector<32x1xi32> to vector<32x1xf32>
    %cst_26 = arith.constant dense<0.000000e+00> : vector<64x1xf32>
    %104 = tpu.matmul %92, %103, %cst_26 {dimension_numbers = #tpu.dot_dimension_numbers<[1], [0], [0], [1], [0, 0, 1, 1], [], []>} : vector<64x32xf32>, vector<32x1xf32>, vector<64x1xf32> -> vector<64x1xf32>
    %105 = vector.broadcast %104 : vector<64x1xf32> to vector<64x32xf32>
    %106 = vector.broadcast %7 : vector<1x32xf32> to vector<64x32xf32>
    %107 = arith.addf %105, %106 : vector<64x32xf32>
    %c0_27 = arith.constant 0 : index
    %c0_28 = arith.constant 0 : index
    %c0_29 = arith.constant 0 : index
    %108 = vector.load %arg6[%c0_27, %c0_28, %c0_29] : memref<1x64x32xf32, #tpu.memory_space<vmem>>, vector<1x64x32xf32>
    %109 = vector.shape_cast %108 : vector<1x64x32xf32> to vector<64x32xf32>
    %110 = vector.shape_cast %107 : vector<64x32xf32> to vector<1x64x32xf32>
    tpu.vector_store %arg6[%c0_27, %c0_28, %c0_29], %110 {strides = array<i32>} : memref<1x64x32xf32, #tpu.memory_space<vmem>>, vector<1x64x32xf32>,
    return
  }
  func.func @transform_0(%arg0: i32) -> (i32, i32, i32) {
    %c0_i32 = arith.constant 0 : i32
    %c0_i32_0 = arith.constant 0 : i32
    %c0_i32_1 = arith.constant 0 : i32
    return %arg0, %c0_i32, %c0_i32_0 : i32, i32, i32
  }
  func.func @transform_1(%arg0: i32) -> (i32, i32, i32) {
    %c0_i32 = arith.constant 0 : i32
    %c0_i32_0 = arith.constant 0 : i32
    %c0_i32_1 = arith.constant 0 : i32
    return %arg0, %c0_i32, %c0_i32_0 : i32, i32, i32
  }
  func.func @transform_2(%arg0: i32) -> (i32, i32, i32) {
    %c0_i32 = arith.constant 0 : i32
    %c0_i32_0 = arith.constant 0 : i32
    %c0_i32_1 = arith.constant 0 : i32
    return %arg0, %c0_i32, %c0_i32_0 : i32, i32, i32
  }
  func.func @transform_3(%arg0: i32) -> (i32, i32) {
    %c0_i32 = arith.constant 0 : i32
    %c0_i32_0 = arith.constant 0 : i32
    %c0_i32_1 = arith.constant 0 : i32
    return %c0_i32, %c0_i32_0 : i32, i32
  }
  func.func @transform_4(%arg0: i32) -> (i32, i32) {
    %c0_i32 = arith.constant 0 : i32
    %c0_i32_0 = arith.constant 0 : i32
    %c0_i32_1 = arith.constant 0 : i32
    return %c0_i32, %c0_i32_0 : i32, i32
  }
  func.func @transform_5(%arg0: i32) -> (i32, i32, i32) {
    %c0_i32 = arith.constant 0 : i32
    %c0_i32_0 = arith.constant 0 : i32
    %c0_i32_1 = arith.constant 0 : i32
    return %arg0, %c0_i32, %c0_i32_0 : i32, i32, i32
  }
}

</mosaic_0001>

<llo_original>
// kernel: tpu_custom_call.1
$region0: #{tpu_custom_call.1}
  #allocation0 [shape = 'u32[]', space=smem, size = 0x4, offset = 0x4, fixed_abs, tag = 'smem constant byte address 0x4 - core index']
  #allocation1 [shape = 'u32[72,128]{1,0:T(1,128)}', space=vmem, size = 0x9000, scoped, tag = 'internal scratch']
  %s0 = inlined_call_operand.vmem [shape: s32[2,64,4], index: 0, kind: input, shape index: {}]
  %s1 = inlined_call_operand.vmem [shape: f32[2,64,3], index: 1, kind: input, shape index: {}]
  %s2 = inlined_call_operand.vmem [shape: f32[2,64,32], index: 2, kind: input, shape index: {}]
  %s3 = inlined_call_operand.vmem [shape: f32[3,32], index: 3, kind: input, shape index: {}]
  %s4 = inlined_call_operand.vmem [shape: f32[1,32], index: 4, kind: input, shape index: {}]
  %s5 = inlined_call_operand.vmem [shape: f32[2,64,32], index: 5, kind: output, shape index: {}]
  %s6 = sld [smem:[#allocation0]]
  $region53: #{tpu_custom_call.1} parent=0
    _
  %s8 = ssub.s32 1, %s6
  %s9 = scalar_select 0, %s8, %s6
  loop: start=0, step=1, limit=4
  $region2: #{tpu_custom_call.1} parent=0 // loop_pre_header
    _
  $region3: #{tpu_custom_call.1} parent=0 // loop_header
    %s11 = sphi 0, %s15
    %p12 = scmp.ge.s32.totalorder %s11, 4
    %s21 = sphi 0, %s23
    %s24 = sphi 0, %s21
    %s25 = sphi 0, %s24
    %s41 = sphi 0, %s25
    %s47 = sphi 0, %s49
    %s50 = sphi 0, %s47
    %s51 = sphi 0, %s50
    %s67 = sphi 0, %s51
    %s73 = sphi 0, %s75
    %s76 = sphi 0, %s73
    %s77 = sphi 0, %s76
    %s93 = sphi 0, %s77
    %s97 = sphi 0, %s97
    %s99 = sphi 0, %s97
    %s100 = sphi 0, %s99
    %s114 = sphi 0, %s100
    %s118 = sphi 0, %s118
    %s120 = sphi 0, %s118
    %s121 = sphi 0, %s120
    %s135 = sphi 0, %s121
    %s141 = sphi 0, %s143
    %s144 = sphi 0, %s141
    %s145 = sphi 0, %s144
    %s161 = sphi 0, %s145
  $region4: #{tpu_custom_call.1} parent=0 // loop_header_branch
    %14 = sbr.rel (%p12) target = $region8
  $region5: #{tpu_custom_call.1} parent=0 // loop_body
    %s16 = ssub.s32 %s11, 1
    %s17 = ssub.s32 %s11, 2
    %s18 = sadd.s32 %s11, 1
    %s19 = ssub.s32 %s11, %s18
    %p20 = scmp.eq.s32.totalorder %s19, 0
    %s22 = sadd.s32 %s21, 1
    %s23 = scalar_select %p20, %s21, %s22
    %p26 = pneg %p20
    %p27 = scmp.eq.s32.totalorder %s11, 1
    %p28 = por %p26, %p27
    %p29 = scmp.ne.s32.totalorder %s21, %s24
    %p30 = scmp.eq.s32.totalorder %s11, 0
    %p31 = por %p29, %p30
    %p32 = scmp.ne.s32.totalorder %s21, %s24
    %p33 = scmp.eq.s32.totalorder %s16, 1
    %p34 = por %p32, %p33
    %p35 = scmp.ne.s32.totalorder %s24, %s25
    %p36 = scmp.eq.s32.totalorder %s16, 0
    %p37 = por %p35, %p36
    %p38 = scmp.ne.s32.totalorder %s24, %s25
    %p39 = scmp.eq.s32.totalorder %s17, 1
    %p40 = por %p38, %p39
    %p42 = scmp.ne.s32.totalorder %s25, %s41
    %p43 = scmp.eq.s32.totalorder %s17, 0
    %p44 = por %p42, %p43
    %s45 = ssub.s32 %s11, %s18
    %p46 = scmp.eq.s32.totalorder %s45, 0
    %s48 = sadd.s32 %s47, 1
    %s49 = scalar_select %p46, %s47, %s48
    %p52 = pneg %p46
    %p53 = scmp.eq.s32.totalorder %s11, 1
    %p54 = por %p52, %p53
    %p55 = scmp.ne.s32.totalorder %s47, %s50
    %p56 = scmp.eq.s32.totalorder %s11, 0
    %p57 = por %p55, %p56
    %p58 = scmp.ne.s32.totalorder %s47, %s50
    %p59 = scmp.eq.s32.totalorder %s16, 1
    %p60 = por %p58, %p59
    %p61 = scmp.ne.s32.totalorder %s50, %s51
    %p62 = scmp.eq.s32.totalorder %s16, 0
    %p63 = por %p61, %p62
    %p64 = scmp.ne.s32.totalorder %s50, %s51
    %p65 = scmp.eq.s32.totalorder %s17, 1
    %p66 = por %p64, %p65
    %p68 = scmp.ne.s32.totalorder %s51, %s67
    %p69 = scmp.eq.s32.totalorder %s17, 0
    %p70 = por %p68, %p69
    %s71 = ssub.s32 %s11, %s18
    %p72 = scmp.eq.s32.totalorder %s71, 0
    %s74 = sadd.s32 %s73, 1
    %s75 = scalar_select %p72, %s73, %s74
    %p78 = pneg %p72
    %p79 = scmp.eq.s32.totalorder %s11, 1
    %p80 = por %p78, %p79
    %p81 = scmp.ne.s32.totalorder %s73, %s76
    %p82 = scmp.eq.s32.totalorder %s11, 0
    %p83 = por %p81, %p82
    %p84 = scmp.ne.s32.totalorder %s73, %s76
    %p85 = scmp.eq.s32.totalorder %s16, 1
    %p86 = por %p84, %p85
    %p87 = scmp.ne.s32.totalorder %s76, %s77
    %p88 = scmp.eq.s32.totalorder %s16, 0
    %p89 = por %p87, %p88
    %p90 = scmp.ne.s32.totalorder %s76, %s77
    %p91 = scmp.eq.s32.totalorder %s17, 1
    %p92 = por %p90, %p91
    %p94 = scmp.ne.s32.totalorder %s77, %s93
    %p95 = scmp.eq.s32.totalorder %s17, 0
    %p96 = por %p94, %p95
    %s98 = sadd.s32 %s97, 1
    %p101 = scmp.eq.s32.totalorder %s11, 1
    %p102 = scmp.ne.s32.totalorder %s97, %s99
    %p103 = scmp.eq.s32.totalorder %s11, 0
    %p104 = por %p102, %p103
    %p105 = scmp.ne.s32.totalorder %s97, %s99
    %p106 = scmp.eq.s32.totalorder %s16, 1
    %p107 = por %p105, %p106
    %p108 = scmp.ne.s32.totalorder %s99, %s100
    %p109 = scmp.eq.s32.totalorder %s16, 0
    %p110 = por %p108, %p109
    %p111 = scmp.ne.s32.totalorder %s99, %s100
    %p112 = scmp.eq.s32.totalorder %s17, 1
    %p113 = por %p111, %p112
    %p115 = scmp.ne.s32.totalorder %s100, %s114
    %p116 = scmp.eq.s32.totalorder %s17, 0
    %p117 = por %p115, %p116
    %s119 = sadd.s32 %s118, 1
    %p122 = scmp.eq.s32.totalorder %s11, 1
    %p123 = scmp.ne.s32.totalorder %s118, %s120
    %p124 = scmp.eq.s32.totalorder %s11, 0
    %p125 = por %p123, %p124
    %p126 = scmp.ne.s32.totalorder %s118, %s120
    %p127 = scmp.eq.s32.totalorder %s16, 1
    %p128 = por %p126, %p127
    %p129 = scmp.ne.s32.totalorder %s120, %s121
    %p130 = scmp.eq.s32.totalorder %s16, 0
    %p131 = por %p129, %p130
    %p132 = scmp.ne.s32.totalorder %s120, %s121
    %p133 = scmp.eq.s32.totalorder %s17, 1
    %p134 = por %p132, %p133
    %p136 = scmp.ne.s32.totalorder %s121, %s135
    %p137 = scmp.eq.s32.totalorder %s17, 0
    %p138 = por %p136, %p137
    %s139 = ssub.s32 %s11, %s18
    %p140 = scmp.eq.s32.totalorder %s139, 0
    %s142 = sadd.s32 %s141, 1
    %s143 = scalar_select %p140, %s141, %s142
    %p146 = pneg %p140
    %p147 = scmp.eq.s32.totalorder %s11, 1
    %p148 = por %p146, %p147
    %p149 = scmp.ne.s32.totalorder %s141, %s144
    %p150 = scmp.eq.s32.totalorder %s11, 0
    %p151 = por %p149, %p150
    %p152 = scmp.ne.s32.totalorder %s141, %s144
    %p153 = scmp.eq.s32.totalorder %s16, 1
    %p154 = por %p152, %p153
    %p155 = scmp.ne.s32.totalorder %s144, %s145
    %p156 = scmp.eq.s32.totalorder %s16, 0
    %p157 = por %p155, %p156
    %p158 = scmp.ne.s32.totalorder %s144, %s145
    %p159 = scmp.eq.s32.totalorder %s17, 1
    %p160 = por %p158, %p159
    %p162 = scmp.ne.s32.totalorder %s145, %s161
    %p163 = scmp.eq.s32.totalorder %s17, 0
    %p164 = por %p162, %p163
    %p165 = scmp.le.s32.totalorder 1, %s11
    %p166 = scmp.lt.s32.totalorder %s11, 3
    %p167 = pnand %p165, %p166
    %p168 = pneg %p167
    // Predicated region
    $region9: #{tpu_custom_call.1} parent=5 // pred_check
      _
    $region10: #{tpu_custom_call.1} parent=5 // pred_check_branch
      %170 = sbr.rel (%p167) target = $region12
    $region11: #{tpu_custom_call.1} parent=5 // pred_region
      %s171 = ssub.s32 %s11, 1
      // Predicated region
      $region13: #{tpu_custom_call.1} parent=11 // pred_check
        %p172 = pneg %p110
      $region14: #{tpu_custom_call.1} parent=11 // pred_check_branch
        %174 = sbr.rel (%p172) target = $region16
      $region15: #{tpu_custom_call.1} parent=11 // pred_region
        _
      $region16: #{tpu_custom_call.1} parent=11 // pred_fallthru
        _
      // Predicated region
      $region17: #{tpu_custom_call.1} parent=11 // pred_check
        %p175 = pneg %p131
      $region18: #{tpu_custom_call.1} parent=11 // pred_check_branch
        %177 = sbr.rel (%p175) target = $region20
      $region19: #{tpu_custom_call.1} parent=11 // pred_region
        _
      $region20: #{tpu_custom_call.1} parent=11 // pred_fallthru
        _
    $region12: #{tpu_custom_call.1} parent=5 // pred_fallthru
      _
    %p178 = scmp.lt.s32.totalorder %s11, 2
    // Predicated region
    $region21: #{tpu_custom_call.1} parent=5 // pred_check
      %p179 = pneg %p178
    $region22: #{tpu_custom_call.1} parent=5 // pred_check_branch
      %181 = sbr.rel (%p179) target = $region24
    $region23: #{tpu_custom_call.1} parent=5 // pred_region
      // Predicated region
      $region25: #{tpu_custom_call.1} parent=23 // pred_check
        %p182 = pneg %p31
      $region26: #{tpu_custom_call.1} parent=23 // pred_check_branch
        %184 = sbr.rel (%p182) target = $region28
      $region27: #{tpu_custom_call.1} parent=23 // pred_region
        %p185 = scmp.lt.s32.totalorder %s11, 1
        %s186 = scalar_select %p185, %s11, 1
        %s187 = smul.addr %s186, 8
        %s188 = smul.addr %s187, 8
        %s189 = scalar_lea.vmem %s0, %s188
      $region28: #{tpu_custom_call.1} parent=23 // pred_fallthru
        _
      // Predicated region
      $region29: #{tpu_custom_call.1} parent=23 // pred_check
        %p190 = pneg %p57
      $region30: #{tpu_custom_call.1} parent=23 // pred_check_branch
        %192 = sbr.rel (%p190) target = $region32
      $region31: #{tpu_custom_call.1} parent=23 // pred_region
        %p193 = scmp.lt.s32.totalorder %s11, 1
        %s194 = scalar_select %p193, %s11, 1
        %s195 = smul.addr %s194, 8
        %s196 = smul.addr %s195, 8
        %s197 = scalar_lea.vmem %s1, %s196
      $region32: #{tpu_custom_call.1} parent=23 // pred_fallthru
        _
      // Predicated region
      $region33: #{tpu_custom_call.1} parent=23 // pred_check
        %p198 = pneg %p83
      $region34: #{tpu_custom_call.1} parent=23 // pred_check_branch
        %200 = sbr.rel (%p198) target = $region36
      $region35: #{tpu_custom_call.1} parent=23 // pred_region
        %p201 = scmp.lt.s32.totalorder %s11, 1
        %s202 = scalar_select %p201, %s11, 1
        %s203 = smul.addr %s202, 8
        %s204 = smul.addr %s203, 8
        %s205 = scalar_lea.vmem %s2, %s204
      $region36: #{tpu_custom_call.1} parent=23 // pred_fallthru
        _
    $region24: #{tpu_custom_call.1} parent=5 // pred_fallthru
      _
    %p206 = scmp.le.s32.totalorder 1, %s11
    %p207 = scmp.lt.s32.totalorder %s11, 3
    %p208 = pnand %p206, %p207
    %p209 = pneg %p208
    // Predicated region
    $region37: #{tpu_custom_call.1} parent=5 // pred_check
      _
    $region38: #{tpu_custom_call.1} parent=5 // pred_check_branch
      %211 = sbr.rel (%p208) target = $region40
    $region39: #{tpu_custom_call.1} parent=5 // pred_region
      %s212 = ssub.s32 %s11, 1
      %p213 = scmp.lt.s32.totalorder %s16, 1
      %s214 = scalar_select %p213, %s16, 1
      %s215 = smul.addr %s214, 8
      %s216 = smul.addr %s215, 8
      %s217 = scalar_lea.vmem %s0, %s216
      %p218 = pneg %p37
      %p219 = pneg %p34
      %p220 = scmp.lt.s32.totalorder %s16, 1
      %s221 = scalar_select %p220, %s16, 1
      %s222 = smul.addr %s221, 8
      %s223 = smul.addr %s222, 8
      %s224 = scalar_lea.vmem %s1, %s223
      %p225 = pneg %p63
      %p226 = pneg %p60
      %p227 = scmp.lt.s32.totalorder %s16, 1
      %s228 = scalar_select %p227, %s16, 1
      %s229 = smul.addr %s228, 8
      %s230 = smul.addr %s229, 8
      %s231 = scalar_lea.vmem %s2, %s230
      %p232 = pneg %p89
      %p233 = pneg %p86
      %p234 = pneg %p110
      %p235 = pneg %p107
      %p236 = pneg %p131
      %p237 = pneg %p128
      %p238 = pneg %p157
      %p239 = pneg %p154
      %p240 = scmp.lt.s32.totalorder %s16, 1
      %s241 = scalar_select %p240, %s16, 1
      %s242 = smul.addr %s241, 8
      %s243 = smul.addr %s242, 8
      %s244 = scalar_lea.vmem %s5, %s243
      %p245 = scmp.lt.s32.totalorder %s16, 1
      %s246 = scalar_select %p245, %s16, 1
      %s247 = smul.addr %s246, 8
      %s248 = smul.addr %s247, 8
      %s249 = scalar_lea.vmem %s0, %s248
      %p250 = scmp.lt.s32.totalorder %s16, 1
      %s251 = scalar_select %p250, %s16, 1
      %s252 = smul.addr %s251, 8
      %s253 = smul.addr %s252, 8
      %s254 = scalar_lea.vmem %s1, %s253
      %p255 = scmp.lt.s32.totalorder %s16, 1
      %s256 = scalar_select %p255, %s16, 1
      %s257 = smul.addr %s256, 8
      %s258 = smul.addr %s257, 8
      %s259 = scalar_lea.vmem %s2, %s258
      %p260 = scmp.lt.s32.totalorder %s16, 1
      %s261 = scalar_select %p260, %s16, 1
      %s262 = smul.addr %s261, 8
      %s263 = smul.addr %s262, 8
      %s264 = scalar_lea.vmem %s5, %s263
      %v265 = vld [vmem:[%s249] sm:$0xff]
      %v266 = vld [vmem:[%s249 + $0x8] sm:$0xff]
      %v267 = vld [vmem:[%s249 + $0x10] sm:$0xff]
      %v268 = vld [vmem:[%s249 + $0x18] sm:$0xff]
      %v269 = vld [vmem:[%s249 + $0x20] sm:$0xff]
      %v270 = vld [vmem:[%s249 + $0x28] sm:$0xff]
      %v271 = vld [vmem:[%s249 + $0x30] sm:$0xff]
      %v272 = vld [vmem:[%s249 + $0x38] sm:$0xff]
      %v273 = vld [vmem:[%s254] sm:$0xff]
      %v274 = vld [vmem:[%s254 + $0x8] sm:$0xff]
      %v275 = vld [vmem:[%s254 + $0x10] sm:$0xff]
      %v276 = vld [vmem:[%s254 + $0x18] sm:$0xff]
      %v277 = vld [vmem:[%s254 + $0x20] sm:$0xff]
      %v278 = vld [vmem:[%s254 + $0x28] sm:$0xff]
      %v279 = vld [vmem:[%s254 + $0x30] sm:$0xff]
      %v280 = vld [vmem:[%s254 + $0x38] sm:$0xff]
      %v281 = vld [vmem:[%s259] sm:$0xff]
      %v282 = vld [vmem:[%s259 + $0x8] sm:$0xff]
      %v283 = vld [vmem:[%s259 + $0x10] sm:$0xff]
      %v284 = vld [vmem:[%s259 + $0x18] sm:$0xff]
      %v285 = vld [vmem:[%s259 + $0x20] sm:$0xff]
      %v286 = vld [vmem:[%s259 + $0x28] sm:$0xff]
      %v287 = vld [vmem:[%s259 + $0x30] sm:$0xff]
      %v288 = vld [vmem:[%s259 + $0x38] sm:$0xff]
      %v289 = vld [vmem:[%s3] sm:$0x7]
      %v290 = vld [vmem:[%s4] sm:$0x1]
      %vm291 = vcmask 23552
      %v293 = vsel %vm291, %v273, 0
      %v296 = vsel %vm291, %v274, 0
      %v299 = vsel %vm291, %v275, 0
      %v302 = vsel %vm291, %v276, 0
      %v305 = vsel %vm291, %v277, 0
      %v308 = vsel %vm291, %v278, 0
      %v311 = vsel %vm291, %v279, 0
      %v314 = vsel %vm291, %v280, 0
      %vm316 = vcmask 1042432
      %v318 = vsel %vm316, %v289, 0
      %320 = vmatpush.msra.mxu0 0.0
      %321 = vmatpush.msra.mxu0 0.0
      %322 = vmatpush.msra.mxu0 0.0
      %323 = vmatpush.msra.mxu0 0.0
      %324 = vmatpush.msra.mxu0 0.0
      %325 = vmatpush.msra.mxu0 0.0
      %326 = vmatpush.msra.mxu0 0.0
      %327 = vmatpush.msra.mxu0 0.0
      %328 = vmatpush.msra.mxu0 0.0
      %329 = vmatpush.msra.mxu0 0.0
      %330 = vmatpush.msra.mxu0 0.0
      %331 = vmatpush.msra.mxu0 0.0
      %332 = vmatpush.msra.mxu0 0.0
      %333 = vmatpush.msra.mxu0 0.0
      %334 = vmatpush.msra.mxu0 0.0
      %335 = vmatpush.msra.mxu0 %v318
      %336 = vmatmul.f32.gmra.mxu0 %v293
      %v337 = vpop.f32.mrf.mxu0
      %v338 = vadd.f32 0.0, %v337
      %339 = vmatmul.f32.gmra.mxu0 %v296
      %v340 = vpop.f32.mrf.mxu0
      %v341 = vadd.f32 0.0, %v340
      %342 = vmatmul.f32.gmra.mxu0 %v299
      %v343 = vpop.f32.mrf.mxu0
      %v344 = vadd.f32 0.0, %v343
      %345 = vmatmul.f32.gmra.mxu0 %v302
      %v346 = vpop.f32.mrf.mxu0
      %v347 = vadd.f32 0.0, %v346
      %348 = vmatmul.f32.gmra.mxu0 %v305
      %v349 = vpop.f32.mrf.mxu0
      %v350 = vadd.f32 0.0, %v349
      %351 = vmatmul.f32.gmra.mxu0 %v308
      %v352 = vpop.f32.mrf.mxu0
      %v353 = vadd.f32 0.0, %v352
      %354 = vmatmul.f32.gmra.mxu0 %v311
      %v355 = vpop.f32.mrf.mxu0
      %v356 = vadd.f32 0.0, %v355
      %357 = vmatmul.f32.gmra.mxu0 %v314
      %v358 = vpop.f32.mrf.mxu0
      %v359 = vadd.f32 0.0, %v358
      %360 = vdwg.mxu0
      %369 = vrot.lane.b32.xlu0 %v338, 3
      %v370 = vpop.permute.xlu0 %369
      %371 = vrot.lane.b32.xlu0 %v341, 3
      %v372 = vpop.permute.xlu0 %371
      %373 = vrot.lane.b32.xlu0 %v344, 3
      %v374 = vpop.permute.xlu0 %373
      %375 = vrot.lane.b32.xlu0 %v347, 3
      %v376 = vpop.permute.xlu0 %375
      %377 = vrot.lane.b32.xlu0 %v350, 3
      %v378 = vpop.permute.xlu0 %377
      %379 = vrot.lane.b32.xlu0 %v353, 3
      %v380 = vpop.permute.xlu0 %379
      %381 = vrot.lane.b32.xlu0 %v356, 3
      %v382 = vpop.permute.xlu0 %381
      %383 = vrot.lane.b32.xlu0 %v359, 3
      %v384 = vpop.permute.xlu0 %383
      %v393 = vsel %vm291, %v273, %v370
      %v394 = vsel %vm291, %v274, %v372
      %v395 = vsel %vm291, %v275, %v374
      %v396 = vsel %vm291, %v276, %v376
      %v397 = vsel %vm291, %v277, %v378
      %v398 = vsel %vm291, %v278, %v380
      %v399 = vsel %vm291, %v279, %v382
      %v400 = vsel %vm291, %v280, %v384
      %v401 = vlaneseq
      %v402 = vand.u32 %v401, 127
      %403 = vset.pattern.permute.xlu0 0
      %404 = vperm.xlu0 %403, %v265
      %v405 = vpop.permute.xlu0 %404
      %406 = vset.pattern.permute.xlu0 0
      %407 = vperm.xlu0 %406, %v266
      %v408 = vpop.permute.xlu0 %407
      %409 = vset.pattern.permute.xlu0 0
      %410 = vperm.xlu0 %409, %v267
      %v411 = vpop.permute.xlu0 %410
      %412 = vset.pattern.permute.xlu0 0
      %413 = vperm.xlu0 %412, %v268
      %v414 = vpop.permute.xlu0 %413
      %415 = vset.pattern.permute.xlu0 0
      %416 = vperm.xlu0 %415, %v269
      %v417 = vpop.permute.xlu0 %416
      %418 = vset.pattern.permute.xlu0 0
      %419 = vperm.xlu0 %418, %v270
      %v420 = vpop.permute.xlu0 %419
      %421 = vset.pattern.permute.xlu0 0
      %422 = vperm.xlu0 %421, %v271
      %v423 = vpop.permute.xlu0 %422
      %424 = vset.pattern.permute.xlu0 0
      %425 = vperm.xlu0 %424, %v272
      %v426 = vpop.permute.xlu0 %425
      %vm427 = vcmp.eq.s32.totalorder %v405, %v402
      %vm428 = vcmp.eq.s32.totalorder %v408, %v402
      %vm429 = vcmp.eq.s32.totalorder %v411, %v402
      %vm430 = vcmp.eq.s32.totalorder %v414, %v402
      %vm431 = vcmp.eq.s32.totalorder %v417, %v402
      %vm432 = vcmp.eq.s32.totalorder %v420, %v402
      %vm433 = vcmp.eq.s32.totalorder %v423, %v402
      %vm434 = vcmp.eq.s32.totalorder %v426, %v402
      %v435 = vsel %vm427, 1, 0
      %v436 = vsel %vm428, 1, 0
      %v437 = vsel %vm429, 1, 0
      %v438 = vsel %vm430, 1, 0
      %v439 = vsel %vm431, 1, 0
      %v440 = vsel %vm432, 1, 0
      %v441 = vsel %vm433, 1, 0
      %v442 = vsel %vm434, 1, 0
      %v443 = vcvt.s32.f32 %v435
      %v444 = vcvt.s32.f32 %v436
      %v445 = vcvt.s32.f32 %v437
      %v446 = vcvt.s32.f32 %v438
      %v447 = vcvt.s32.f32 %v439
      %v448 = vcvt.s32.f32 %v440
      %v449 = vcvt.s32.f32 %v441
      %v450 = vcvt.s32.f32 %v442
      %451 = vset.pattern.permute.xlu0 1
      %452 = vperm.xlu0 %451, %v265
      %v453 = vpop.permute.xlu0 %452
      %454 = vset.pattern.permute.xlu0 1
      %455 = vperm.xlu0 %454, %v266
      %v456 = vpop.permute.xlu0 %455
      %457 = vset.pattern.permute.xlu0 1
      %458 = vperm.xlu0 %457, %v267
      %v459 = vpop.permute.xlu0 %458
      %460 = vset.pattern.permute.xlu0 1
      %461 = vperm.xlu0 %460, %v268
      %v462 = vpop.permute.xlu0 %461
      %463 = vset.pattern.permute.xlu0 1
      %464 = vperm.xlu0 %463, %v269
      %v465 = vpop.permute.xlu0 %464
      %466 = vset.pattern.permute.xlu0 1
      %467 = vperm.xlu0 %466, %v270
      %v468 = vpop.permute.xlu0 %467
      %469 = vset.pattern.permute.xlu0 1
      %470 = vperm.xlu0 %469, %v271
      %v471 = vpop.permute.xlu0 %470
      %472 = vset.pattern.permute.xlu0 1
      %473 = vperm.xlu0 %472, %v272
      %v474 = vpop.permute.xlu0 %473
      %vm475 = vcmp.eq.s32.totalorder %v453, %v402
      %vm476 = vcmp.eq.s32.totalorder %v456, %v402
      %vm477 = vcmp.eq.s32.totalorder %v459, %v402
      %vm478 = vcmp.eq.s32.totalorder %v462, %v402
      %vm479 = vcmp.eq.s32.totalorder %v465, %v402
      %vm480 = vcmp.eq.s32.totalorder %v468, %v402
      %vm481 = vcmp.eq.s32.totalorder %v471, %v402
      %vm482 = vcmp.eq.s32.totalorder %v474, %v402
      %v483 = vsel %vm475, 1, 0
      %v484 = vsel %vm476, 1, 0
      %v485 = vsel %vm477, 1, 0
      %v486 = vsel %vm478, 1, 0
      %v487 = vsel %vm479, 1, 0
      %v488 = vsel %vm480, 1, 0
      %v489 = vsel %vm481, 1, 0
      %v490 = vsel %vm482, 1, 0
      %v491 = vcvt.s32.f32 %v483
      %v492 = vcvt.s32.f32 %v484
      %v493 = vcvt.s32.f32 %v485
      %v494 = vcvt.s32.f32 %v486
      %v495 = vcvt.s32.f32 %v487
      %v496 = vcvt.s32.f32 %v488
      %v497 = vcvt.s32.f32 %v489
      %v498 = vcvt.s32.f32 %v490
      %499 = vset.pattern.permute.xlu0 2
      %500 = vperm.xlu0 %499, %v265
      %v501 = vpop.permute.xlu0 %500
      %502 = vset.pattern.permute.xlu0 2
      %503 = vperm.xlu0 %502, %v266
      %v504 = vpop.permute.xlu0 %503
      %505 = vset.pattern.permute.xlu0 2
      %506 = vperm.xlu0 %505, %v267
      %v507 = vpop.permute.xlu0 %506
      %508 = vset.pattern.permute.xlu0 2
      %509 = vperm.xlu0 %508, %v268
      %v510 = vpop.permute.xlu0 %509
      %511 = vset.pattern.permute.xlu0 2
      %512 = vperm.xlu0 %511, %v269
      %v513 = vpop.permute.xlu0 %512
      %514 = vset.pattern.permute.xlu0 2
      %515 = vperm.xlu0 %514, %v270
      %v516 = vpop.permute.xlu0 %515
      %517 = vset.pattern.permute.xlu0 2
      %518 = vperm.xlu0 %517, %v271
      %v519 = vpop.permute.xlu0 %518
      %520 = vset.pattern.permute.xlu0 2
      %521 = vperm.xlu0 %520, %v272
      %v522 = vpop.permute.xlu0 %521
      %vm523 = vcmp.eq.s32.totalorder %v501, %v402
      %vm524 = vcmp.eq.s32.totalorder %v504, %v402
      %vm525 = vcmp.eq.s32.totalorder %v507, %v402
      %vm526 = vcmp.eq.s32.totalorder %v510, %v402
      %vm527 = vcmp.eq.s32.totalorder %v513, %v402
      %vm528 = vcmp.eq.s32.totalorder %v516, %v402
      %vm529 = vcmp.eq.s32.totalorder %v519, %v402
      %vm530 = vcmp.eq.s32.totalorder %v522, %v402
      %v531 = vsel %vm523, 1, 0
      %v532 = vsel %vm524, 1, 0
      %v533 = vsel %vm525, 1, 0
      %v534 = vsel %vm526, 1, 0
      %v535 = vsel %vm527, 1, 0
      %v536 = vsel %vm528, 1, 0
      %v537 = vsel %vm529, 1, 0
      %v538 = vsel %vm530, 1, 0
      %v539 = vcvt.s32.f32 %v531
      %v540 = vcvt.s32.f32 %v532
      %v541 = vcvt.s32.f32 %v533
      %v542 = vcvt.s32.f32 %v534
      %v543 = vcvt.s32.f32 %v535
      %v544 = vcvt.s32.f32 %v536
      %v545 = vcvt.s32.f32 %v537
      %v546 = vcvt.s32.f32 %v538
      %547 = vset.pattern.permute.xlu0 3
      %548 = vperm.xlu0 %547, %v265
      %v549 = vpop.permute.xlu0 %548
      %550 = vset.pattern.permute.xlu0 3
      %551 = vperm.xlu0 %550, %v266
      %v552 = vpop.permute.xlu0 %551
      %553 = vset.pattern.permute.xlu0 3
      %554 = vperm.xlu0 %553, %v267
      %v555 = vpop.permute.xlu0 %554
      %556 = vset.pattern.permute.xlu0 3
      %557 = vperm.xlu0 %556, %v268
      %v558 = vpop.permute.xlu0 %557
      %559 = vset.pattern.permute.xlu0 3
      %560 = vperm.xlu0 %559, %v269
      %v561 = vpop.permute.xlu0 %560
      %562 = vset.pattern.permute.xlu0 3
      %563 = vperm.xlu0 %562, %v270
      %v564 = vpop.permute.xlu0 %563
      %565 = vset.pattern.permute.xlu0 3
      %566 = vperm.xlu0 %565, %v271
      %v567 = vpop.permute.xlu0 %566
      %568 = vset.pattern.permute.xlu0 3
      %569 = vperm.xlu0 %568, %v272
      %v570 = vpop.permute.xlu0 %569
      %vm571 = vcmp.eq.s32.totalorder %v549, %v402
      %vm572 = vcmp.eq.s32.totalorder %v552, %v402
      %vm573 = vcmp.eq.s32.totalorder %v555, %v402
      %vm574 = vcmp.eq.s32.totalorder %v558, %v402
      %vm575 = vcmp.eq.s32.totalorder %v561, %v402
      %vm576 = vcmp.eq.s32.totalorder %v564, %v402
      %vm577 = vcmp.eq.s32.totalorder %v567, %v402
      %vm578 = vcmp.eq.s32.totalorder %v570, %v402
      %v579 = vsel %vm571, 1, 0
      %v580 = vsel %vm572, 1, 0
      %v581 = vsel %vm573, 1, 0
      %v582 = vsel %vm574, 1, 0
      %v583 = vsel %vm575, 1, 0
      %v584 = vsel %vm576, 1, 0
      %v585 = vsel %vm577, 1, 0
      %v586 = vsel %vm578, 1, 0
      %v587 = vcvt.s32.f32 %v579
      %v588 = vcvt.s32.f32 %v580
      %v589 = vcvt.s32.f32 %v581
      %v590 = vcvt.s32.f32 %v582
      %v591 = vcvt.s32.f32 %v583
      %v592 = vcvt.s32.f32 %v584
      %v593 = vcvt.s32.f32 %v585
      %v594 = vcvt.s32.f32 %v586
      %vm595 = vcmask 523264
      %v597 = vsel %vm595, %v443, 0
      %v600 = vsel %vm595, %v444, 0
      %v603 = vsel %vm595, %v445, 0
      %v606 = vsel %vm595, %v446, 0
      %v609 = vsel %vm595, %v447, 0
      %v612 = vsel %vm595, %v448, 0
      %v615 = vsel %vm595, %v449, 0
      %v618 = vsel %vm595, %v450, 0
      %v621 = vsel %vm595, %v491, 0
      %v624 = vsel %vm595, %v492, 0
      %v627 = vsel %vm595, %v493, 0
      %v630 = vsel %vm595, %v494, 0
      %v633 = vsel %vm595, %v495, 0
      %v636 = vsel %vm595, %v496, 0
      %v639 = vsel %vm595, %v497, 0
      %v642 = vsel %vm595, %v498, 0
      %v645 = vsel %vm595, %v539, 0
      %v648 = vsel %vm595, %v540, 0
      %v651 = vsel %vm595, %v541, 0
      %v654 = vsel %vm595, %v542, 0
      %v657 = vsel %vm595, %v543, 0
      %v660 = vsel %vm595, %v544, 0
      %v663 = vsel %vm595, %v545, 0
      %v666 = vsel %vm595, %v546, 0
      %v669 = vsel %vm595, %v587, 0
      %v672 = vsel %vm595, %v588, 0
      %v675 = vsel %vm595, %v589, 0
      %v678 = vsel %vm595, %v590, 0
      %v681 = vsel %vm595, %v591, 0
      %v684 = vsel %vm595, %v592, 0
      %v687 = vsel %vm595, %v593, 0
      %v690 = vsel %vm595, %v594, 0
      %692 = vmatpush.msra.mxu0 0.0
      %693 = vmatpush.msra.mxu0 0.0
      %694 = vmatpush.msra.mxu0 0.0
      %695 = vmatpush.msra.mxu0 0.0
      %696 = vmatpush.msra.mxu0 0.0
      %697 = vmatpush.msra.mxu0 0.0
      %698 = vmatpush.msra.mxu0 0.0
      %699 = vmatpush.msra.mxu0 0.0
      %700 = vmatpush.msra.mxu0 %v400
      %701 = vmatpush.msra.mxu0 %v399
      %702 = vmatpush.msra.mxu0 %v398
      %703 = vmatpush.msra.mxu0 %v397
      %704 = vmatpush.msra.mxu0 %v396
      %705 = vmatpush.msra.mxu0 %v395
      %706 = vmatpush.msra.mxu0 %v394
      %707 = vmatpush.msra.mxu0 %v393
      %708 = vmatmul.f32.gmra.mxu0 %v597
      %v709 = vpop.f32.mrf.mxu0
      %v710 = vadd.f32 0.0, %v709
      %711 = vmatmul.f32.gmra.mxu0 %v600
      %v712 = vpop.f32.mrf.mxu0
      %v713 = vadd.f32 0.0, %v712
      %714 = vmatmul.f32.gmra.mxu0 %v603
      %v715 = vpop.f32.mrf.mxu0
      %v716 = vadd.f32 0.0, %v715
      %717 = vmatmul.f32.gmra.mxu0 %v606
      %v718 = vpop.f32.mrf.mxu0
      %v719 = vadd.f32 0.0, %v718
      %720 = vmatmul.f32.gmra.mxu0 %v609
      %v721 = vpop.f32.mrf.mxu0
      %v722 = vadd.f32 0.0, %v721
      %723 = vmatmul.f32.gmra.mxu0 %v612
      %v724 = vpop.f32.mrf.mxu0
      %v725 = vadd.f32 0.0, %v724
      %726 = vmatmul.f32.gmra.mxu0 %v615
      %v727 = vpop.f32.mrf.mxu0
      %v728 = vadd.f32 0.0, %v727
      %729 = vmatmul.f32.gmra.mxu0 %v618
      %v730 = vpop.f32.mrf.mxu0
      %v731 = vadd.f32 0.0, %v730
      %732 = vmatmul.f32.gmra.mxu0 %v621
      %v733 = vpop.f32.mrf.mxu0
      %v734 = vadd.f32 0.0, %v733
      %735 = vmatmul.f32.gmra.mxu0 %v624
      %v736 = vpop.f32.mrf.mxu0
      %v737 = vadd.f32 0.0, %v736
      %738 = vmatmul.f32.gmra.mxu0 %v627
      %v739 = vpop.f32.mrf.mxu0
      %v740 = vadd.f32 0.0, %v739
      %741 = vmatmul.f32.gmra.mxu0 %v630
      %v742 = vpop.f32.mrf.mxu0
      %v743 = vadd.f32 0.0, %v742
      %744 = vmatmul.f32.gmra.mxu0 %v633
      %v745 = vpop.f32.mrf.mxu0
      %v746 = vadd.f32 0.0, %v745
      %747 = vmatmul.f32.gmra.mxu0 %v636
      %v748 = vpop.f32.mrf.mxu0
      %v749 = vadd.f32 0.0, %v748
      %750 = vmatmul.f32.gmra.mxu0 %v639
      %v751 = vpop.f32.mrf.mxu0
      %v752 = vadd.f32 0.0, %v751
      %753 = vmatmul.f32.gmra.mxu0 %v642
      %v754 = vpop.f32.mrf.mxu0
      %v755 = vadd.f32 0.0, %v754
      %756 = vmatmul.f32.gmra.mxu0 %v645
      %v757 = vpop.f32.mrf.mxu0
      %v758 = vadd.f32 0.0, %v757
      %759 = vmatmul.f32.gmra.mxu0 %v648
      %v760 = vpop.f32.mrf.mxu0
      %v761 = vadd.f32 0.0, %v760
      %762 = vmatmul.f32.gmra.mxu0 %v651
      %v763 = vpop.f32.mrf.mxu0
      %v764 = vadd.f32 0.0, %v763
      %765 = vmatmul.f32.gmra.mxu0 %v654
      %v766 = vpop.f32.mrf.mxu0
      %v767 = vadd.f32 0.0, %v766
      %768 = vmatmul.f32.gmra.mxu0 %v657
      %v769 = vpop.f32.mrf.mxu0
      %v770 = vadd.f32 0.0, %v769
      %771 = vmatmul.f32.gmra.mxu0 %v660
      %v772 = vpop.f32.mrf.mxu0
      %v773 = vadd.f32 0.0, %v772
      %774 = vmatmul.f32.gmra.mxu0 %v663
      %v775 = vpop.f32.mrf.mxu0
      %v776 = vadd.f32 0.0, %v775
      %777 = vmatmul.f32.gmra.mxu0 %v666
      %v778 = vpop.f32.mrf.mxu0
      %v779 = vadd.f32 0.0, %v778
      %780 = vmatmul.f32.gmra.mxu0 %v669
      %v781 = vpop.f32.mrf.mxu0
      %v782 = vadd.f32 0.0, %v781
      %783 = vmatmul.f32.gmra.mxu0 %v672
      %v784 = vpop.f32.mrf.mxu0
      %v785 = vadd.f32 0.0, %v784
      %786 = vmatmul.f32.gmra.mxu0 %v675
      %v787 = vpop.f32.mrf.mxu0
      %v788 = vadd.f32 0.0, %v787
      %789 = vmatmul.f32.gmra.mxu0 %v678
      %v790 = vpop.f32.mrf.mxu0
      %v791 = vadd.f32 0.0, %v790
      %792 = vmatmul.f32.gmra.mxu0 %v681
      %v793 = vpop.f32.mrf.mxu0
      %v794 = vadd.f32 0.0, %v793
      %795 = vmatmul.f32.gmra.mxu0 %v684
      %v796 = vpop.f32.mrf.mxu0
      %v797 = vadd.f32 0.0, %v796
      %798 = vmatmul.f32.gmra.mxu0 %v687
      %v799 = vpop.f32.mrf.mxu0
      %v800 = vadd.f32 0.0, %v799
      %801 = vmatmul.f32.gmra.mxu0 %v690
      %v802 = vpop.f32.mrf.mxu0
      %v803 = vadd.f32 0.0, %v802
      %804 = vdwg.mxu0
      %v805 = vsub.f32 %v710, %v393
      %v806 = vsub.f32 %v713, %v394
      %v807 = vsub.f32 %v716, %v395
      %v808 = vsub.f32 %v719, %v396
      %v809 = vsub.f32 %v722, %v397
      %v810 = vsub.f32 %v725, %v398
      %v811 = vsub.f32 %v728, %v399
      %v812 = vsub.f32 %v731, %v400
      %v813 = vmul.f32 %v805, %v805
      %v814 = vmul.f32 %v806, %v806
      %v815 = vmul.f32 %v807, %v807
      %v816 = vmul.f32 %v808, %v808
      %v817 = vmul.f32 %v809, %v809
      %v818 = vmul.f32 %v810, %v810
      %v819 = vmul.f32 %v811, %v811
      %v820 = vmul.f32 %v812, %v812
      %v821 = vsel %vm291, %v813, 0.0
      %822 = vadd.xlane.f32.xlu0 %v821
      %v823 = vpop.xlane.xlu0 %822
      %v824 = vsel %vm291, %v814, 0.0
      %825 = vadd.xlane.f32.xlu0 %v824
      %v826 = vpop.xlane.xlu0 %825
      %v827 = vsel %vm291, %v815, 0.0
      %828 = vadd.xlane.f32.xlu0 %v827
      %v829 = vpop.xlane.xlu0 %828
      %v830 = vsel %vm291, %v816, 0.0
      %831 = vadd.xlane.f32.xlu0 %v830
      %v832 = vpop.xlane.xlu0 %831
      %v833 = vsel %vm291, %v817, 0.0
      %834 = vadd.xlane.f32.xlu0 %v833
      %v835 = vpop.xlane.xlu0 %834
      %v836 = vsel %vm291, %v818, 0.0
      %837 = vadd.xlane.f32.xlu0 %v836
      %v838 = vpop.xlane.xlu0 %837
      %v839 = vsel %vm291, %v819, 0.0
      %840 = vadd.xlane.f32.xlu0 %v839
      %v841 = vpop.xlane.xlu0 %840
      %v842 = vsel %vm291, %v820, 0.0
      %843 = vadd.xlane.f32.xlu0 %v842
      %v844 = vpop.xlane.xlu0 %843
      %v845 = vmax.f32 %v823, 1e-24
      %v846 = vmax.f32 %v826, 1e-24
      %v847 = vmax.f32 %v829, 1e-24
      %v848 = vmax.f32 %v832, 1e-24
      %v849 = vmax.f32 %v835, 1e-24
      %v850 = vmax.f32 %v838, 1e-24
      %v851 = vmax.f32 %v841, 1e-24
      %v852 = vmax.f32 %v844, 1e-24
      %v853 = vrsqrt.pop %v845
      %v854 = vmul.f32 %v853, %v845
      %v855 = vmul.f32 %v854, %v853
      %v856 = vmul.f32 0.5, %v855
      %v857 = vsub.f32 1.5, %v856
      %v858 = vmul.f32 %v853, %v857
      %vm859 = vweird.f32 %v845
      %vm860 = vweird.f32 %v853
      %vm861 = vmor %vm859, %vm860
      %v862 = vsel %vm861, %v853, %v858
      %v863 = vrsqrt.pop %v846
      %v864 = vmul.f32 %v863, %v846
      %v865 = vmul.f32 %v864, %v863
      %v866 = vmul.f32 0.5, %v865
      %v867 = vsub.f32 1.5, %v866
      %v868 = vmul.f32 %v863, %v867
      %vm869 = vweird.f32 %v846
      %vm870 = vweird.f32 %v863
      %vm871 = vmor %vm869, %vm870
      %v872 = vsel %vm871, %v863, %v868
      %v873 = vrsqrt.pop %v847
      %v874 = vmul.f32 %v873, %v847
      %v875 = vmul.f32 %v874, %v873
      %v876 = vmul.f32 0.5, %v875
      %v877 = vsub.f32 1.5, %v876
      %v878 = vmul.f32 %v873, %v877
      %vm879 = vweird.f32 %v847
      %vm880 = vweird.f32 %v873
      %vm881 = vmor %vm879, %vm880
      %v882 = vsel %vm881, %v873, %v878
      %v883 = vrsqrt.pop %v848
      %v884 = vmul.f32 %v883, %v848
      %v885 = vmul.f32 %v884, %v883
      %v886 = vmul.f32 0.5, %v885
      %v887 = vsub.f32 1.5, %v886
      %v888 = vmul.f32 %v883, %v887
      %vm889 = vweird.f32 %v848
      %vm890 = vweird.f32 %v883
      %vm891 = vmor %vm889, %vm890
      %v892 = vsel %vm891, %v883, %v888
      %v893 = vrsqrt.pop %v849
      %v894 = vmul.f32 %v893, %v849
      %v895 = vmul.f32 %v894, %v893
      %v896 = vmul.f32 0.5, %v895
      %v897 = vsub.f32 1.5, %v896
      %v898 = vmul.f32 %v893, %v897
      %vm899 = vweird.f32 %v849
      %vm900 = vweird.f32 %v893
      %vm901 = vmor %vm899, %vm900
      %v902 = vsel %vm901, %v893, %v898
      %v903 = vrsqrt.pop %v850
      %v904 = vmul.f32 %v903, %v850
      %v905 = vmul.f32 %v904, %v903
      %v906 = vmul.f32 0.5, %v905
      %v907 = vsub.f32 1.5, %v906
      %v908 = vmul.f32 %v903, %v907
      %vm909 = vweird.f32 %v850
      %vm910 = vweird.f32 %v903
      %vm911 = vmor %vm909, %vm910
      %v912 = vsel %vm911, %v903, %v908
      %v913 = vrsqrt.pop %v851
      %v914 = vmul.f32 %v913, %v851
      %v915 = vmul.f32 %v914, %v913
      %v916 = vmul.f32 0.5, %v915
      %v917 = vsub.f32 1.5, %v916
      %v918 = vmul.f32 %v913, %v917
      %vm919 = vweird.f32 %v851
      %vm920 = vweird.f32 %v913
      %vm921 = vmor %vm919, %vm920
      %v922 = vsel %vm921, %v913, %v918
      %v923 = vrsqrt.pop %v852
      %v924 = vmul.f32 %v923, %v852
      %v925 = vmul.f32 %v924, %v923
      %v926 = vmul.f32 0.5, %v925
      %v927 = vsub.f32 1.5, %v926
      %v928 = vmul.f32 %v923, %v927
      %vm929 = vweird.f32 %v852
      %vm930 = vweird.f32 %v923
      %vm931 = vmor %vm929, %vm930
      %v932 = vsel %vm931, %v923, %v928
      %v933 = vmul.f32 %v805, %v862
      %v934 = vmul.f32 %v806, %v872
      %v935 = vmul.f32 %v807, %v882
      %v936 = vmul.f32 %v808, %v892
      %v937 = vmul.f32 %v809, %v902
      %v938 = vmul.f32 %v810, %v912
      %v939 = vmul.f32 %v811, %v922
      %v940 = vmul.f32 %v812, %v932
      %v941 = vmax.f32 %v933, 0.0
      %v942 = vmax.f32 %v934, 0.0
      %v943 = vmax.f32 %v935, 0.0
      %v944 = vmax.f32 %v936, 0.0
      %v945 = vmax.f32 %v937, 0.0
      %v946 = vmax.f32 %v938, 0.0
      %v947 = vmax.f32 %v939, 0.0
      %v948 = vmax.f32 %v940, 0.0
      %v949 = vsub.f32 %v734, %v393
      %v950 = vsub.f32 %v737, %v394
      %v951 = vsub.f32 %v740, %v395
      %v952 = vsub.f32 %v743, %v396
      %v953 = vsub.f32 %v746, %v397
      %v954 = vsub.f32 %v749, %v398
      %v955 = vsub.f32 %v752, %v399
      %v956 = vsub.f32 %v755, %v400
      %v957 = vmul.f32 %v949, %v949
      %v958 = vmul.f32 %v950, %v950
      %v959 = vmul.f32 %v951, %v951
      %v960 = vmul.f32 %v952, %v952
      %v961 = vmul.f32 %v953, %v953
      %v962 = vmul.f32 %v954, %v954
      %v963 = vmul.f32 %v955, %v955
      %v964 = vmul.f32 %v956, %v956
      %v965 = vsel %vm291, %v957, 0.0
      %966 = vadd.xlane.f32.xlu0 %v965
      %v967 = vpop.xlane.xlu0 %966
      %v968 = vsel %vm291, %v958, 0.0
      %969 = vadd.xlane.f32.xlu0 %v968
      %v970 = vpop.xlane.xlu0 %969
      %v971 = vsel %vm291, %v959, 0.0
      %972 = vadd.xlane.f32.xlu0 %v971
      %v973 = vpop.xlane.xlu0 %972
      %v974 = vsel %vm291, %v960, 0.0
      %975 = vadd.xlane.f32.xlu0 %v974
      %v976 = vpop.xlane.xlu0 %975
      %v977 = vsel %vm291, %v961, 0.0
      %978 = vadd.xlane.f32.xlu0 %v977
      %v979 = vpop.xlane.xlu0 %978
      %v980 = vsel %vm291, %v962, 0.0
      %981 = vadd.xlane.f32.xlu0 %v980
      %v982 = vpop.xlane.xlu0 %981
      %v983 = vsel %vm291, %v963, 0.0
      %984 = vadd.xlane.f32.xlu0 %v983
      %v985 = vpop.xlane.xlu0 %984
      %v986 = vsel %vm291, %v964, 0.0
      %987 = vadd.xlane.f32.xlu0 %v986
      %v988 = vpop.xlane.xlu0 %987
      %v989 = vmax.f32 %v967, 1e-24
      %v990 = vmax.f32 %v970, 1e-24
      %v991 = vmax.f32 %v973, 1e-24
      %v992 = vmax.f32 %v976, 1e-24
      %v993 = vmax.f32 %v979, 1e-24
      %v994 = vmax.f32 %v982, 1e-24
      %v995 = vmax.f32 %v985, 1e-24
      %v996 = vmax.f32 %v988, 1e-24
      %v997 = vrsqrt.pop %v989
      %v998 = vmul.f32 %v997, %v989
      %v999 = vmul.f32 %v998, %v997
      %v1000 = vmul.f32 0.5, %v999
      %v1001 = vsub.f32 1.5, %v1000
      %v1002 = vmul.f32 %v997, %v1001
      %vm1003 = vweird.f32 %v989
      %vm1004 = vweird.f32 %v997
      %vm1005 = vmor %vm1003, %vm1004
      %v1006 = vsel %vm1005, %v997, %v1002
      %v1007 = vrsqrt.pop %v990
      %v1008 = vmul.f32 %v1007, %v990
      %v1009 = vmul.f32 %v1008, %v1007
      %v1010 = vmul.f32 0.5, %v1009
      %v1011 = vsub.f32 1.5, %v1010
      %v1012 = vmul.f32 %v1007, %v1011
      %vm1013 = vweird.f32 %v990
      %vm1014 = vweird.f32 %v1007
      %vm1015 = vmor %vm1013, %vm1014
      %v1016 = vsel %vm1015, %v1007, %v1012
      %v1017 = vrsqrt.pop %v991
      %v1018 = vmul.f32 %v1017, %v991
      %v1019 = vmul.f32 %v1018, %v1017
      %v1020 = vmul.f32 0.5, %v1019
      %v1021 = vsub.f32 1.5, %v1020
      %v1022 = vmul.f32 %v1017, %v1021
      %vm1023 = vweird.f32 %v991
      %vm1024 = vweird.f32 %v1017
      %vm1025 = vmor %vm1023, %vm1024
      %v1026 = vsel %vm1025, %v1017, %v1022
      %v1027 = vrsqrt.pop %v992
      %v1028 = vmul.f32 %v1027, %v992
      %v1029 = vmul.f32 %v1028, %v1027
      %v1030 = vmul.f32 0.5, %v1029
      %v1031 = vsub.f32 1.5, %v1030
      %v1032 = vmul.f32 %v1027, %v1031
      %vm1033 = vweird.f32 %v992
      %vm1034 = vweird.f32 %v1027
      %vm1035 = vmor %vm1033, %vm1034
      %v1036 = vsel %vm1035, %v1027, %v1032
      %v1037 = vrsqrt.pop %v993
      %v1038 = vmul.f32 %v1037, %v993
      %v1039 = vmul.f32 %v1038, %v1037
      %v1040 = vmul.f32 0.5, %v1039
      %v1041 = vsub.f32 1.5, %v1040
      %v1042 = vmul.f32 %v1037, %v1041
      %vm1043 = vweird.f32 %v993
      %vm1044 = vweird.f32 %v1037
      %vm1045 = vmor %vm1043, %vm1044
      %v1046 = vsel %vm1045, %v1037, %v1042
      %v1047 = vrsqrt.pop %v994
      %v1048 = vmul.f32 %v1047, %v994
      %v1049 = vmul.f32 %v1048, %v1047
      %v1050 = vmul.f32 0.5, %v1049
      %v1051 = vsub.f32 1.5, %v1050
      %v1052 = vmul.f32 %v1047, %v1051
      %vm1053 = vweird.f32 %v994
      %vm1054 = vweird.f32 %v1047
      %vm1055 = vmor %vm1053, %vm1054
      %v1056 = vsel %vm1055, %v1047, %v1052
      %v1057 = vrsqrt.pop %v995
      %v1058 = vmul.f32 %v1057, %v995
      %v1059 = vmul.f32 %v1058, %v1057
      %v1060 = vmul.f32 0.5, %v1059
      %v1061 = vsub.f32 1.5, %v1060
      %v1062 = vmul.f32 %v1057, %v1061
      %vm1063 = vweird.f32 %v995
      %vm1064 = vweird.f32 %v1057
      %vm1065 = vmor %vm1063, %vm1064
      %v1066 = vsel %vm1065, %v1057, %v1062
      %v1067 = vrsqrt.pop %v996
      %v1068 = vmul.f32 %v1067, %v996
      %v1069 = vmul.f32 %v1068, %v1067
      %v1070 = vmul.f32 0.5, %v1069
      %v1071 = vsub.f32 1.5, %v1070
      %v1072 = vmul.f32 %v1067, %v1071
      %vm1073 = vweird.f32 %v996
      %vm1074 = vweird.f32 %v1067
      %vm1075 = vmor %vm1073, %vm1074
      %v1076 = vsel %vm1075, %v1067, %v1072
      %v1077 = vmul.f32 %v949, %v1006
      %v1078 = vmul.f32 %v950, %v1016
      %v1079 = vmul.f32 %v951, %v1026
      %v1080 = vmul.f32 %v952, %v1036
      %v1081 = vmul.f32 %v953, %v1046
      %v1082 = vmul.f32 %v954, %v1056
      %v1083 = vmul.f32 %v955, %v1066
      %v1084 = vmul.f32 %v956, %v1076
      %v1085 = vmax.f32 %v1077, 0.0
      %v1086 = vmax.f32 %v1078, 0.0
      %v1087 = vmax.f32 %v1079, 0.0
      %v1088 = vmax.f32 %v1080, 0.0
      %v1089 = vmax.f32 %v1081, 0.0
      %v1090 = vmax.f32 %v1082, 0.0
      %v1091 = vmax.f32 %v1083, 0.0
      %v1092 = vmax.f32 %v1084, 0.0
      %v1093 = vmax.f32 %v941, %v1085
      %v1094 = vmax.f32 %v942, %v1086
      %v1095 = vmax.f32 %v943, %v1087
      %v1096 = vmax.f32 %v944, %v1088
      %v1097 = vmax.f32 %v945, %v1089
      %v1098 = vmax.f32 %v946, %v1090
      %v1099 = vmax.f32 %v947, %v1091
      %v1100 = vmax.f32 %v948, %v1092
      %v1101 = vsub.f32 %v758, %v393
      %v1102 = vsub.f32 %v761, %v394
      %v1103 = vsub.f32 %v764, %v395
      %v1104 = vsub.f32 %v767, %v396
      %v1105 = vsub.f32 %v770, %v397
      %v1106 = vsub.f32 %v773, %v398
      %v1107 = vsub.f32 %v776, %v399
      %v1108 = vsub.f32 %v779, %v400
      %v1109 = vmul.f32 %v1101, %v1101
      %v1110 = vmul.f32 %v1102, %v1102
      %v1111 = vmul.f32 %v1103, %v1103
      %v1112 = vmul.f32 %v1104, %v1104
      %v1113 = vmul.f32 %v1105, %v1105
      %v1114 = vmul.f32 %v1106, %v1106
      %v1115 = vmul.f32 %v1107, %v1107
      %v1116 = vmul.f32 %v1108, %v1108
      %v1117 = vsel %vm291, %v1109, 0.0
      %1118 = vadd.xlane.f32.xlu0 %v1117
      %v1119 = vpop.xlane.xlu0 %1118
      %v1120 = vsel %vm291, %v1110, 0.0
      %1121 = vadd.xlane.f32.xlu0 %v1120
      %v1122 = vpop.xlane.xlu0 %1121
      %v1123 = vsel %vm291, %v1111, 0.0
      %1124 = vadd.xlane.f32.xlu0 %v1123
      %v1125 = vpop.xlane.xlu0 %1124
      %v1126 = vsel %vm291, %v1112, 0.0
      %1127 = vadd.xlane.f32.xlu0 %v1126
      %v1128 = vpop.xlane.xlu0 %1127
      %v1129 = vsel %vm291, %v1113, 0.0
      %1130 = vadd.xlane.f32.xlu0 %v1129
      %v1131 = vpop.xlane.xlu0 %1130
      %v1132 = vsel %vm291, %v1114, 0.0
      %1133 = vadd.xlane.f32.xlu0 %v1132
      %v1134 = vpop.xlane.xlu0 %1133
      %v1135 = vsel %vm291, %v1115, 0.0
      %1136 = vadd.xlane.f32.xlu0 %v1135
      %v1137 = vpop.xlane.xlu0 %1136
      %v1138 = vsel %vm291, %v1116, 0.0
      %1139 = vadd.xlane.f32.xlu0 %v1138
      %v1140 = vpop.xlane.xlu0 %1139
      %v1141 = vmax.f32 %v1119, 1e-24
      %v1142 = vmax.f32 %v1122, 1e-24
      %v1143 = vmax.f32 %v1125, 1e-24
      %v1144 = vmax.f32 %v1128, 1e-24
      %v1145 = vmax.f32 %v1131, 1e-24
      %v1146 = vmax.f32 %v1134, 1e-24
      %v1147 = vmax.f32 %v1137, 1e-24
      %v1148 = vmax.f32 %v1140, 1e-24
      %v1149 = vrsqrt.pop %v1141
      %v1150 = vmul.f32 %v1149, %v1141
      %v1151 = vmul.f32 %v1150, %v1149
      %v1152 = vmul.f32 0.5, %v1151
      %v1153 = vsub.f32 1.5, %v1152
      %v1154 = vmul.f32 %v1149, %v1153
      %vm1155 = vweird.f32 %v1141
      %vm1156 = vweird.f32 %v1149
      %vm1157 = vmor %vm1155, %vm1156
      %v1158 = vsel %vm1157, %v1149, %v1154
      %v1159 = vrsqrt.pop %v1142
      %v1160 = vmul.f32 %v1159, %v1142
      %v1161 = vmul.f32 %v1160, %v1159
      %v1162 = vmul.f32 0.5, %v1161
      %v1163 = vsub.f32 1.5, %v1162
      %v1164 = vmul.f32 %v1159, %v1163
      %vm1165 = vweird.f32 %v1142
      %vm1166 = vweird.f32 %v1159
      %vm1167 = vmor %vm1165, %vm1166
      %v1168 = vsel %vm1167, %v1159, %v1164
      %v1169 = vrsqrt.pop %v1143
      %v1170 = vmul.f32 %v1169, %v1143
      %v1171 = vmul.f32 %v1170, %v1169
      %v1172 = vmul.f32 0.5, %v1171
      %v1173 = vsub.f32 1.5, %v1172
      %v1174 = vmul.f32 %v1169, %v1173
      %vm1175 = vweird.f32 %v1143
      %vm1176 = vweird.f32 %v1169
      %vm1177 = vmor %vm1175, %vm1176
      %v1178 = vsel %vm1177, %v1169, %v1174
      %v1179 = vrsqrt.pop %v1144
      %v1180 = vmul.f32 %v1179, %v1144
      %v1181 = vmul.f32 %v1180, %v1179
      %v1182 = vmul.f32 0.5, %v1181
      %v1183 = vsub.f32 1.5, %v1182
      %v1184 = vmul.f32 %v1179, %v1183
      %vm1185 = vweird.f32 %v1144
      %vm1186 = vweird.f32 %v1179
      %vm1187 = vmor %vm1185, %vm1186
      %v1188 = vsel %vm1187, %v1179, %v1184
      %v1189 = vrsqrt.pop %v1145
      %v1190 = vmul.f32 %v1189, %v1145
      %v1191 = vmul.f32 %v1190, %v1189
      %v1192 = vmul.f32 0.5, %v1191
      %v1193 = vsub.f32 1.5, %v1192
      %v1194 = vmul.f32 %v1189, %v1193
      %vm1195 = vweird.f32 %v1145
      %vm1196 = vweird.f32 %v1189
      %vm1197 = vmor %vm1195, %vm1196
      %v1198 = vsel %vm1197, %v1189, %v1194
      %v1199 = vrsqrt.pop %v1146
      %v1200 = vmul.f32 %v1199, %v1146
      %v1201 = vmul.f32 %v1200, %v1199
      %v1202 = vmul.f32 0.5, %v1201
      %v1203 = vsub.f32 1.5, %v1202
      %v1204 = vmul.f32 %v1199, %v1203
      %vm1205 = vweird.f32 %v1146
      %vm1206 = vweird.f32 %v1199
      %vm1207 = vmor %vm1205, %vm1206
      %v1208 = vsel %vm1207, %v1199, %v1204
      %v1209 = vrsqrt.pop %v1147
      %v1210 = vmul.f32 %v1209, %v1147
      %v1211 = vmul.f32 %v1210, %v1209
      %v1212 = vmul.f32 0.5, %v1211
      %v1213 = vsub.f32 1.5, %v1212
      %v1214 = vmul.f32 %v1209, %v1213
      %vm1215 = vweird.f32 %v1147
      %vm1216 = vweird.f32 %v1209
      %vm1217 = vmor %vm1215, %vm1216
      %v1218 = vsel %vm1217, %v1209, %v1214
      %v1219 = vrsqrt.pop %v1148
      %v1220 = vmul.f32 %v1219, %v1148
      %v1221 = vmul.f32 %v1220, %v1219
      %v1222 = vmul.f32 0.5, %v1221
      %v1223 = vsub.f32 1.5, %v1222
      %v1224 = vmul.f32 %v1219, %v1223
      %vm1225 = vweird.f32 %v1148
      %vm1226 = vweird.f32 %v1219
      %vm1227 = vmor %vm1225, %vm1226
      %v1228 = vsel %vm1227, %v1219, %v1224
      %v1229 = vmul.f32 %v1101, %v1158
      %v1230 = vmul.f32 %v1102, %v1168
      %v1231 = vmul.f32 %v1103, %v1178
      %v1232 = vmul.f32 %v1104, %v1188
      %v1233 = vmul.f32 %v1105, %v1198
      %v1234 = vmul.f32 %v1106, %v1208
      %v1235 = vmul.f32 %v1107, %v1218
      %v1236 = vmul.f32 %v1108, %v1228
      %v1237 = vmax.f32 %v1229, 0.0
      %v1238 = vmax.f32 %v1230, 0.0
      %v1239 = vmax.f32 %v1231, 0.0
      %v1240 = vmax.f32 %v1232, 0.0
      %v1241 = vmax.f32 %v1233, 0.0
      %v1242 = vmax.f32 %v1234, 0.0
      %v1243 = vmax.f32 %v1235, 0.0
      %v1244 = vmax.f32 %v1236, 0.0
      %v1245 = vmax.f32 %v1093, %v1237
      %v1246 = vmax.f32 %v1094, %v1238
      %v1247 = vmax.f32 %v1095, %v1239
      %v1248 = vmax.f32 %v1096, %v1240
      %v1249 = vmax.f32 %v1097, %v1241
      %v1250 = vmax.f32 %v1098, %v1242
      %v1251 = vmax.f32 %v1099, %v1243
      %v1252 = vmax.f32 %v1100, %v1244
      %v1253 = vsub.f32 %v782, %v393
      %v1254 = vsub.f32 %v785, %v394
      %v1255 = vsub.f32 %v788, %v395
      %v1256 = vsub.f32 %v791, %v396
      %v1257 = vsub.f32 %v794, %v397
      %v1258 = vsub.f32 %v797, %v398
      %v1259 = vsub.f32 %v800, %v399
      %v1260 = vsub.f32 %v803, %v400
      %v1261 = vmul.f32 %v1253, %v1253
      %v1262 = vmul.f32 %v1254, %v1254
      %v1263 = vmul.f32 %v1255, %v1255
      %v1264 = vmul.f32 %v1256, %v1256
      %v1265 = vmul.f32 %v1257, %v1257
      %v1266 = vmul.f32 %v1258, %v1258
      %v1267 = vmul.f32 %v1259, %v1259
      %v1268 = vmul.f32 %v1260, %v1260
      %v1269 = vsel %vm291, %v1261, 0.0
      %1270 = vadd.xlane.f32.xlu0 %v1269
      %v1271 = vpop.xlane.xlu0 %1270
      %v1272 = vsel %vm291, %v1262, 0.0
      %1273 = vadd.xlane.f32.xlu0 %v1272
      %v1274 = vpop.xlane.xlu0 %1273
      %v1275 = vsel %vm291, %v1263, 0.0
      %1276 = vadd.xlane.f32.xlu0 %v1275
      %v1277 = vpop.xlane.xlu0 %1276
      %v1278 = vsel %vm291, %v1264, 0.0
      %1279 = vadd.xlane.f32.xlu0 %v1278
      %v1280 = vpop.xlane.xlu0 %1279
      %v1281 = vsel %vm291, %v1265, 0.0
      %1282 = vadd.xlane.f32.xlu0 %v1281
      %v1283 = vpop.xlane.xlu0 %1282
      %v1284 = vsel %vm291, %v1266, 0.0
      %1285 = vadd.xlane.f32.xlu0 %v1284
      %v1286 = vpop.xlane.xlu0 %1285
      %v1287 = vsel %vm291, %v1267, 0.0
      %1288 = vadd.xlane.f32.xlu0 %v1287
      %v1289 = vpop.xlane.xlu0 %1288
      %v1290 = vsel %vm291, %v1268, 0.0
      %1291 = vadd.xlane.f32.xlu0 %v1290
      %v1292 = vpop.xlane.xlu0 %1291
      %v1293 = vmax.f32 %v1271, 1e-24
      %v1294 = vmax.f32 %v1274, 1e-24
      %v1295 = vmax.f32 %v1277, 1e-24
      %v1296 = vmax.f32 %v1280, 1e-24
      %v1297 = vmax.f32 %v1283, 1e-24
      %v1298 = vmax.f32 %v1286, 1e-24
      %v1299 = vmax.f32 %v1289, 1e-24
      %v1300 = vmax.f32 %v1292, 1e-24
      %v1301 = vrsqrt.pop %v1293
      %v1302 = vmul.f32 %v1301, %v1293
      %v1303 = vmul.f32 %v1302, %v1301
      %v1304 = vmul.f32 0.5, %v1303
      %v1305 = vsub.f32 1.5, %v1304
      %v1306 = vmul.f32 %v1301, %v1305
      %vm1307 = vweird.f32 %v1293
      %vm1308 = vweird.f32 %v1301
      %vm1309 = vmor %vm1307, %vm1308
      %v1310 = vsel %vm1309, %v1301, %v1306
      %v1311 = vrsqrt.pop %v1294
      %v1312 = vmul.f32 %v1311, %v1294
      %v1313 = vmul.f32 %v1312, %v1311
      %v1314 = vmul.f32 0.5, %v1313
      %v1315 = vsub.f32 1.5, %v1314
      %v1316 = vmul.f32 %v1311, %v1315
      %vm1317 = vweird.f32 %v1294
      %vm1318 = vweird.f32 %v1311
      %vm1319 = vmor %vm1317, %vm1318
      %v1320 = vsel %vm1319, %v1311, %v1316
      %v1321 = vrsqrt.pop %v1295
      %v1322 = vmul.f32 %v1321, %v1295
      %v1323 = vmul.f32 %v1322, %v1321
      %v1324 = vmul.f32 0.5, %v1323
      %v1325 = vsub.f32 1.5, %v1324
      %v1326 = vmul.f32 %v1321, %v1325
      %vm1327 = vweird.f32 %v1295
      %vm1328 = vweird.f32 %v1321
      %vm1329 = vmor %vm1327, %vm1328
      %v1330 = vsel %vm1329, %v1321, %v1326
      %v1331 = vrsqrt.pop %v1296
      %v1332 = vmul.f32 %v1331, %v1296
      %v1333 = vmul.f32 %v1332, %v1331
      %v1334 = vmul.f32 0.5, %v1333
      %v1335 = vsub.f32 1.5, %v1334
      %v1336 = vmul.f32 %v1331, %v1335
      %vm1337 = vweird.f32 %v1296
      %vm1338 = vweird.f32 %v1331
      %vm1339 = vmor %vm1337, %vm1338
      %v1340 = vsel %vm1339, %v1331, %v1336
      %v1341 = vrsqrt.pop %v1297
      %v1342 = vmul.f32 %v1341, %v1297
      %v1343 = vmul.f32 %v1342, %v1341
      %v1344 = vmul.f32 0.5, %v1343
      %v1345 = vsub.f32 1.5, %v1344
      %v1346 = vmul.f32 %v1341, %v1345
      %vm1347 = vweird.f32 %v1297
      %vm1348 = vweird.f32 %v1341
      %vm1349 = vmor %vm1347, %vm1348
      %v1350 = vsel %vm1349, %v1341, %v1346
      %v1351 = vrsqrt.pop %v1298
      %v1352 = vmul.f32 %v1351, %v1298
      %v1353 = vmul.f32 %v1352, %v1351
      %v1354 = vmul.f32 0.5, %v1353
      %v1355 = vsub.f32 1.5, %v1354
      %v1356 = vmul.f32 %v1351, %v1355
      %vm1357 = vweird.f32 %v1298
      %vm1358 = vweird.f32 %v1351
      %vm1359 = vmor %vm1357, %vm1358
      %v1360 = vsel %vm1359, %v1351, %v1356
      %v1361 = vrsqrt.pop %v1299
      %v1362 = vmul.f32 %v1361, %v1299
      %v1363 = vmul.f32 %v1362, %v1361
      %v1364 = vmul.f32 0.5, %v1363
      %v1365 = vsub.f32 1.5, %v1364
      %v1366 = vmul.f32 %v1361, %v1365
      %vm1367 = vweird.f32 %v1299
      %vm1368 = vweird.f32 %v1361
      %vm1369 = vmor %vm1367, %vm1368
      %v1370 = vsel %vm1369, %v1361, %v1366
      %v1371 = vrsqrt.pop %v1300
      %v1372 = vmul.f32 %v1371, %v1300
      %v1373 = vmul.f32 %v1372, %v1371
      %v1374 = vmul.f32 0.5, %v1373
      %v1375 = vsub.f32 1.5, %v1374
      %v1376 = vmul.f32 %v1371, %v1375
      %vm1377 = vweird.f32 %v1300
      %vm1378 = vweird.f32 %v1371
      %vm1379 = vmor %vm1377, %vm1378
      %v1380 = vsel %vm1379, %v1371, %v1376
      %v1381 = vmul.f32 %v1253, %v1310
      %v1382 = vmul.f32 %v1254, %v1320
      %v1383 = vmul.f32 %v1255, %v1330
      %v1384 = vmul.f32 %v1256, %v1340
      %v1385 = vmul.f32 %v1257, %v1350
      %v1386 = vmul.f32 %v1258, %v1360
      %v1387 = vmul.f32 %v1259, %v1370
      %v1388 = vmul.f32 %v1260, %v1380
      %v1389 = vmax.f32 %v1381, 0.0
      %v1390 = vmax.f32 %v1382, 0.0
      %v1391 = vmax.f32 %v1383, 0.0
      %v1392 = vmax.f32 %v1384, 0.0
      %v1393 = vmax.f32 %v1385, 0.0
      %v1394 = vmax.f32 %v1386, 0.0
      %v1395 = vmax.f32 %v1387, 0.0
      %v1396 = vmax.f32 %v1388, 0.0
      %v1397 = vmax.f32 %v1245, %v1389
      %v1398 = vmax.f32 %v1246, %v1390
      %v1399 = vmax.f32 %v1247, %v1391
      %v1400 = vmax.f32 %v1248, %v1392
      %v1401 = vmax.f32 %v1249, %v1393
      %v1402 = vmax.f32 %v1250, %v1394
      %v1403 = vmax.f32 %v1251, %v1395
      %v1404 = vmax.f32 %v1252, %v1396
      %1413 = vrot.lane.b32.xlu0 %v281, 3
      %v1414 = vpop.permute.xlu0 %1413
      %1415 = vrot.lane.b32.xlu0 %v282, 3
      %v1416 = vpop.permute.xlu0 %1415
      %1417 = vrot.lane.b32.xlu0 %v283, 3
      %v1418 = vpop.permute.xlu0 %1417
      %1419 = vrot.lane.b32.xlu0 %v284, 3
      %v1420 = vpop.permute.xlu0 %1419
      %1421 = vrot.lane.b32.xlu0 %v285, 3
      %v1422 = vpop.permute.xlu0 %1421
      %1423 = vrot.lane.b32.xlu0 %v286, 3
      %v1424 = vpop.permute.xlu0 %1423
      %1425 = vrot.lane.b32.xlu0 %v287, 3
      %v1426 = vpop.permute.xlu0 %1425
      %1427 = vrot.lane.b32.xlu0 %v288, 3
      %v1428 = vpop.permute.xlu0 %1427
      %v1437 = vmul.f32 %v1397, %v1414
      %v1438 = vmul.f32 %v1398, %v1416
      %v1439 = vmul.f32 %v1399, %v1418
      %v1440 = vmul.f32 %v1400, %v1420
      %v1441 = vmul.f32 %v1401, %v1422
      %v1442 = vmul.f32 %v1402, %v1424
      %v1443 = vmul.f32 %v1403, %v1426
      %v1444 = vmul.f32 %v1404, %v1428
      %v1445 = vlaneseq
      %v1446 = vshrl.u32 %v1445, 7
      %v1447 = vadd.s32 %v1446, 8
      %v1448 = vadd.s32 %v1446, 16
      %v1449 = vadd.s32 %v1446, 24
      %v1450 = vmul.u32 %v402, 32
      %vm1451 = vcmp.ge.s32.totalorder %v1446, %v1450
      %vm1452 = vcmp.ge.s32.totalorder %v1447, %v1450
      %vm1453 = vcmp.ge.s32.totalorder %v1448, %v1450
      %vm1454 = vcmp.ge.s32.totalorder %v1449, %v1450
      %v1455 = vadd.s32 %v1450, 32
      %vm1456 = vcmp.lt.s32.totalorder %v1446, %v1455
      %vm1457 = vcmp.lt.s32.totalorder %v1447, %v1455
      %vm1458 = vcmp.lt.s32.totalorder %v1448, %v1455
      %vm1459 = vcmp.lt.s32.totalorder %v1449, %v1455
      %vm1460 = vmand %vm1451, %vm1456
      %vm1461 = vmand %vm1452, %vm1457
      %vm1462 = vmand %vm1453, %vm1458
      %vm1463 = vmand %vm1454, %vm1459
      %v1464 = vsel %vm1460, 1, 0
      %v1465 = vsel %vm1461, 1, 0
      %v1466 = vsel %vm1462, 1, 0
      %v1467 = vsel %vm1463, 1, 0
      %v1468 = vcvt.s32.f32 %v1464
      %v1469 = vcvt.s32.f32 %v1465
      %v1470 = vcvt.s32.f32 %v1466
      %v1471 = vcvt.s32.f32 %v1467
      %1480 = vrot.lane.b32.xlu0 %v1437, 125
      %v1481 = vpop.permute.xlu0 %1480
      %1482 = vrot.lane.b32.xlu0 %v1438, 125
      %v1483 = vpop.permute.xlu0 %1482
      %1484 = vrot.lane.b32.xlu0 %v1439, 125
      %v1485 = vpop.permute.xlu0 %1484
      %1486 = vrot.lane.b32.xlu0 %v1440, 125
      %v1487 = vpop.permute.xlu0 %1486
      %1488 = vrot.lane.b32.xlu0 %v1441, 125
      %v1489 = vpop.permute.xlu0 %1488
      %1490 = vrot.lane.b32.xlu0 %v1442, 125
      %v1491 = vpop.permute.xlu0 %1490
      %1492 = vrot.lane.b32.xlu0 %v1443, 125
      %v1493 = vpop.permute.xlu0 %1492
      %1494 = vrot.lane.b32.xlu0 %v1444, 125
      %v1495 = vpop.permute.xlu0 %1494
      %vm1496 = vcmask 261120
      %v1497 = vsel %vm1496, %v1481, 0
      %v1499 = vsel %vm1496, %v1483, 0
      %v1501 = vsel %vm1496, %v1485, 0
      %v1503 = vsel %vm1496, %v1487, 0
      %v1505 = vsel %vm1496, %v1489, 0
      %v1507 = vsel %vm1496, %v1491, 0
      %v1509 = vsel %vm1496, %v1493, 0
      %v1511 = vsel %vm1496, %v1495, 0
      %1513 = vmatpush.msra.mxu0 0.0
      %1514 = vmatpush.msra.mxu0 0.0
      %1515 = vmatpush.msra.mxu0 0.0
      %1516 = vmatpush.msra.mxu0 0.0
      %1517 = vmatpush.msra.mxu0 0.0
      %1518 = vmatpush.msra.mxu0 0.0
      %1519 = vmatpush.msra.mxu0 0.0
      %1520 = vmatpush.msra.mxu0 0.0
      %1521 = vmatpush.msra.mxu0 0.0
      %1522 = vmatpush.msra.mxu0 0.0
      %1523 = vmatpush.msra.mxu0 0.0
      %1524 = vmatpush.msra.mxu0 0.0
      %1525 = vmatpush.msra.mxu0 %v1471
      %1526 = vmatpush.msra.mxu0 %v1470
      %1527 = vmatpush.msra.mxu0 %v1469
      %1528 = vmatpush.msra.mxu0 %v1468
      %1529 = vmatmul.f32.gmra.mxu0 %v1497
      %v1530 = vpop.f32.mrf.mxu0
      %v1531 = vadd.f32 0.0, %v1530
      %1532 = vmatmul.f32.gmra.mxu0 %v1499
      %v1533 = vpop.f32.mrf.mxu0
      %v1534 = vadd.f32 0.0, %v1533
      %1535 = vmatmul.f32.gmra.mxu0 %v1501
      %v1536 = vpop.f32.mrf.mxu0
      %v1537 = vadd.f32 0.0, %v1536
      %1538 = vmatmul.f32.gmra.mxu0 %v1503
      %v1539 = vpop.f32.mrf.mxu0
      %v1540 = vadd.f32 0.0, %v1539
      %1541 = vmatmul.f32.gmra.mxu0 %v1505
      %v1542 = vpop.f32.mrf.mxu0
      %v1543 = vadd.f32 0.0, %v1542
      %1544 = vmatmul.f32.gmra.mxu0 %v1507
      %v1545 = vpop.f32.mrf.mxu0
      %v1546 = vadd.f32 0.0, %v1545
      %1547 = vmatmul.f32.gmra.mxu0 %v1509
      %v1548 = vpop.f32.mrf.mxu0
      %v1549 = vadd.f32 0.0, %v1548
      %1550 = vmatmul.f32.gmra.mxu0 %v1511
      %v1551 = vpop.f32.mrf.mxu0
      %v1552 = vadd.f32 0.0, %v1551
      %1553 = vdwg.mxu0
      %1555 = vset.pattern.permute.xlu0 0
      %1556 = vperm.xlu0 %1555, %v1531
      %v1557 = vpop.permute.xlu0 %1556
      %1560 = vset.pattern.permute.xlu0 0
      %1561 = vperm.xlu0 %1560, %v1534
      %v1562 = vpop.permute.xlu0 %1561
      %1565 = vset.pattern.permute.xlu0 0
      %1566 = vperm.xlu0 %1565, %v1537
      %v1567 = vpop.permute.xlu0 %1566
      %1570 = vset.pattern.permute.xlu0 0
      %1571 = vperm.xlu0 %1570, %v1540
      %v1572 = vpop.permute.xlu0 %1571
      %1575 = vset.pattern.permute.xlu0 0
      %1576 = vperm.xlu0 %1575, %v1543
      %v1577 = vpop.permute.xlu0 %1576
      %1580 = vset.pattern.permute.xlu0 0
      %1581 = vperm.xlu0 %1580, %v1546
      %v1582 = vpop.permute.xlu0 %1581
      %1585 = vset.pattern.permute.xlu0 0
      %1586 = vperm.xlu0 %1585, %v1549
      %v1587 = vpop.permute.xlu0 %1586
      %1590 = vset.pattern.permute.xlu0 0
      %1591 = vperm.xlu0 %1590, %v1552
      %v1592 = vpop.permute.xlu0 %1591
      %v1595 = vperm.slane %v290, 0
      %v1597 = vadd.f32 %v1557, %v1595
      %v1598 = vadd.f32 %v1562, %v1595
      %v1599 = vadd.f32 %v1567, %v1595
      %v1600 = vadd.f32 %v1572, %v1595
      %v1601 = vadd.f32 %v1577, %v1595
      %v1602 = vadd.f32 %v1582, %v1595
      %v1603 = vadd.f32 %v1587, %v1595
      %v1604 = vadd.f32 %v1592, %v1595
      %1605 = vst.msk [vmem:[%s264] sm:$0xff] %vm1496, %v1597
      %1606 = vst.msk [vmem:[%s264 + $0x8] sm:$0xff] %vm1496, %v1598
      %1607 = vst.msk [vmem:[%s264 + $0x10] sm:$0xff] %vm1496, %v1599
      %1608 = vst.msk [vmem:[%s264 + $0x18] sm:$0xff] %vm1496, %v1600
      %1609 = vst.msk [vmem:[%s264 + $0x20] sm:$0xff] %vm1496, %v1601
      %1610 = vst.msk [vmem:[%s264 + $0x28] sm:$0xff] %vm1496, %v1602
      %1611 = vst.msk [vmem:[%s264 + $0x30] sm:$0xff] %vm1496, %v1603
      %1612 = vst.msk [vmem:[%s264 + $0x38] sm:$0xff] %vm1496, %v1604
      %p1613 = scmp.lt.s32.totalorder %s16, 1
      %s1614 = scalar_select %p1613, %s16, 1
      %s1615 = smul.addr %s1614, 8
      %s1616 = smul.addr %s1615, 8
      %s1617 = scalar_lea.vmem %s5, %s1616
      // Predicated region
      $region41: #{tpu_custom_call.1} parent=39 // pred_check
        %p1618 = pneg %p154
      $region42: #{tpu_custom_call.1} parent=39 // pred_check_branch
        %1620 = sbr.rel (%p1618) target = $region44
      $region43: #{tpu_custom_call.1} parent=39 // pred_region
        _
      $region44: #{tpu_custom_call.1} parent=39 // pred_fallthru
        _
    $region40: #{tpu_custom_call.1} parent=5 // pred_fallthru
      _
    %p1621 = scmp.le.s32.totalorder 2, %s11
    // Predicated region
    $region45: #{tpu_custom_call.1} parent=5 // pred_check
      %p1622 = pneg %p1621
    $region46: #{tpu_custom_call.1} parent=5 // pred_check_branch
      %1624 = sbr.rel (%p1622) target = $region48
    $region47: #{tpu_custom_call.1} parent=5 // pred_region
      %s1625 = ssub.s32 %s11, 2
      // Predicated region
      $region49: #{tpu_custom_call.1} parent=47 // pred_check
        %p1626 = pneg %p160
      $region50: #{tpu_custom_call.1} parent=47 // pred_check_branch
        %1628 = sbr.rel (%p1626) target = $region52
      $region51: #{tpu_custom_call.1} parent=47 // pred_region
        %p1629 = scmp.lt.s32.totalorder %s17, 1
        %s1630 = scalar_select %p1629, %s17, 1
        %s1631 = smul.addr %s1630, 8
        %s1632 = smul.addr %s1631, 8
        %s1633 = scalar_lea.vmem %s5, %s1632
      $region52: #{tpu_custom_call.1} parent=47 // pred_fallthru
        _
    $region48: #{tpu_custom_call.1} parent=5 // pred_fallthru
      _
  $region6: #{tpu_custom_call.1} parent=0 // loop_footer
    %s15 = sadd.s32 1, %s11
  $region7: #{tpu_custom_call.1} parent=0 // loop_footer_branch
    %10 = sbr.rel target = $region3
  $region8: #{tpu_custom_call.1} parent=0 // loop_exit
    _

</llo_original>
